<compile_context>
chip_gen: v7x
topology: tpu7x:2x2x1
jax: 0.10.0
libtpu: 0.0.40
codegen_flags: <defaults>
</compile_context>

<pallas_src>
import functools

import jax
import jax.numpy as jnp
from jax import lax
from jax.experimental import pallas as pl
from jax.experimental.pallas import tpu as pltpu

D_MODEL = 256
PATCH = 16                      # patch_len W

_UNROLL_STEPS = 8               # static-unroll threshold for the encoder loop
_GI_HOIST_BYTES = 3 * 512 * 1024     # 1.5 MiB bound on hoisted gi tiles
_DEC_CHUNK_BYTES = 2 * 1024 * 1024   # bound on the batched decoder gi chunk


def _round_up(a, b):
    return ((a + b - 1) // b) * b


def _gru_gates(gi, gh, bhh_n, h):
    # PyTorch GRU gate order: r, z, n.
    #  gi already contains b_ih (all gates) and b_hh for the r/z gates.
    #  gh is h @ whh^T with NO bias; bhh_n is the hidden bias of the n gate.
    #  h_new = (1-z)*n + z*h  ==  n + z*(h-n)   (fewer VPU ops on the chain)
    d = D_MODEL
    r = jax.nn.sigmoid(gi[:, :d] + gh[:, :d])
    z = jax.nn.sigmoid(gi[:, d:2 * d] + gh[:, d:2 * d])
    n = jnp.tanh(gi[:, 2 * d:] + r * (gh[:, 2 * d:] + bhh_n))
    return n + z * (h - n)


# ---------------------------------------------------------------------------
# Fused kernel: per row-block of B*C series
#   encoder:   gi_t = x_patch_t @ W_comb + b_enc   (h-independent, off-chain)
#              h    = GRUCell(gi_t, h)             (only gh on the chain)
#   decoder:   M independent single-step GRU tokens sharing hidden h,
#              y[:, m*W:(m+1)*W] = GRUCell(pos_m ++ chan, h) @ wre.T + bre
# ---------------------------------------------------------------------------
def segrnn_kernel(x_ref, ch_ref, wcomb_ref, benc_ref, whh_ref, bhhn_ref,
                  wihc_ref, bdec_ref, gpos_ref, wre_ref, bre_ref, y_ref):
    d = D_MODEL
    tb, seq_len = x_ref.shape
    n_steps = seq_len // PATCH          # N (static)
    n_out = gpos_ref.shape[0]           # M (static)

    wcomb = wcomb_ref[...]              # (PATCH, 3d)  bf16
    benc = benc_ref[...]                # (1, 3d)      f32 (bih + bp@wih + bhh_rz)
    whh = whh_ref[...]                  # (d, 3d)      bf16
    bhh_n = bhhn_ref[...]               # (1, d)       f32

    def gi_from(xt):                    # input projection, independent of h
        return jnp.dot(xt, wcomb, preferred_element_type=jnp.float32) + benc

    h = jnp.zeros((tb, d), jnp.float32)

    if n_steps <= _UNROLL_STEPS:
        # Short sequences: static unroll; hoist gi only while the live bytes
        # stay small (avoids spilling onto the serial recurrence).
        x = x_ref[...]                  # (tb, seq_len) bf16, lane-dense
        hoist = (n_steps * tb * 3 * d * 4) <= _GI_HOIST_BYTES
        gi_all = ([gi_from(x[:, t * PATCH:(t + 1) * PATCH])
                   for t in range(n_steps)] if hoist else None)
        for t in range(n_steps):
            gi = gi_all[t] if hoist else gi_from(x[:, t * PATCH:(t + 1) * PATCH])
            # NOTE: h cast to bf16 only for the MXU operand; h itself stays f32.
            gh = jnp.dot(h.astype(jnp.bfloat16), whh,
                         preferred_element_type=jnp.float32)
            h = _gru_gates(gi, gh, bhh_n, h)
    else:
        # Long sequences: rolled loop with small unroll keeps code size and
        # live ranges bounded while the gh matmul stays pipelined.
        def body(t, h):
            start = pl.multiple_of(t * PATCH, PATCH)
            gi = gi_from(x_ref[:, pl.ds(start, PATCH)])
            gh = jnp.dot(h.astype(jnp.bfloat16), whh,
                         preferred_element_type=jnp.float32)
            return _gru_gates(gi, gh, bhh_n, h)
        h = lax.fori_loop(0, n_steps, body, h, unroll=2)

    # --------------------------- decoder epilogue ---------------------------
    # gi_dec(m) = gch + gpos[m]  (gch carries bih + bhh_rz); gh_dec shared.
    gch = jnp.dot(ch_ref[...], wihc_ref[...],
                  preferred_element_type=jnp.float32) + bdec_ref[...]   # (tb,3d)
    gh_dec = jnp.dot(h.astype(jnp.bfloat16), whh,
                     preferred_element_type=jnp.float32)                 # (tb,3d)
    base_rz = gch[:, :2 * d] + gh_dec[:, :2 * d]                         # (tb,2d)
    gch_n = gch[:, 2 * d:]                                               # (tb,d)
    ghn = gh_dec[:, 2 * d:] + bhh_n                                      # (tb,d)
    gpos = gpos_ref[...]                # (M, 3d) f32 (pos_emb @ wih_pos)
    wre = wre_ref[...]                  # (d, PATCH) bf16
    bre = bre_ref[...]                  # (1, PATCH) f32

    # Batch output tokens in VMEM-bounded chunks (fills vregs / MXU rows,
    # removes per-m dispatch) instead of M tiny matmuls.
    chunk = max(1, min(n_out, _DEC_CHUNK_BYTES // (tb * 3 * d * 4)))
    ys = []
    for m0 in range(0, n_out, chunk):
        mc = min(chunk, n_out - m0)
        g = gpos[m0:m0 + mc]                                   # (mc, 3d)
        rz = jax.nn.sigmoid(base_rz[None, :, :] + g[:, None, :2 * d])
        r = rz[..., :d]
        z = rz[..., d:]
        n = jnp.tanh(gch_n[None, :, :] + g[:, None, 2 * d:] + r * ghn[None, :, :])
        hm = n + z * (h[None, :, :] - n)                       # (mc, tb, d)
        ym = jnp.dot(hm.reshape(mc * tb, d).astype(jnp.bfloat16), wre,
                     preferred_element_type=jnp.float32) + bre  # (mc*tb, PATCH)
        for j in range(mc):
            ys.append(ym[j * tb:(j + 1) * tb, :])

    # Pad output lanes up to the (>=128-multiple) block width so the store is
    # unmasked / lane-dense; wrapper slices back to pred_len.
    pad = y_ref.shape[1] - n_out * PATCH
    if pad:
        ys.append(jnp.zeros((tb, pad), jnp.float32))
    y_ref[...] = jnp.concatenate(ys, axis=1)


def _pick_block_rows(bc):
    # Large row blocks keep the MXU rows filled and amortize per-grid-step
    # overhead; keep tb<=256 so BC>=512 still yields grid>=2 blocks for v7x
    # megacore sharding.  (tb=512 could be allowed on v5e/v6e's 128 MiB VMEM.)
    if bc >= 512:
        return 256
    if bc >= 128:
        return 128
    # Tiny problems: a single block covering all (sublane-rounded) rows.
    return max(8, _round_up(bc, 8))


def run_segrnn(x_bc, ch_bc, w, pred_len):
    BC, seq_len = x_bc.shape
    tb = _pick_block_rows(BC)
    bc_pad = _round_up(BC, tb)
    pred_pad = _round_up(pred_len, 128)

    if bc_pad != BC:
        x_bc = jnp.pad(x_bc, ((0, bc_pad - BC), (0, 0)))
        ch_bc = jnp.pad(ch_bc, ((0, bc_pad - BC), (0, 0)))

    grid = (bc_pad // tb,)

    def rows(cols):
        return pl.BlockSpec((tb, cols), lambda i: (i, 0))

    def full(a):
        return pl.BlockSpec(a.shape, lambda i: (0, 0))

    out = pl.pallas_call(
        segrnn_kernel,
        out_shape=jax.ShapeDtypeStruct((bc_pad, pred_pad), jnp.float32),
        grid=grid,
        in_specs=[
            rows(seq_len),                   # x (lane-dense, time on lanes)
            rows(D_MODEL // 2),              # per-row channel embedding
            full(w["w_comb"]), full(w["b_enc"]),
            full(w["whh_t"]), full(w["bhh_n"]),
            full(w["wih_ch_t"]), full(w["b_dec"]),
            full(w["gpos"]), full(w["wre_t"]), full(w["bre"]),
        ],
        out_specs=rows(pred_pad),
        compiler_params=pltpu.CompilerParams(
            dimension_semantics=("parallel",),
            vmem_limit_bytes=32 * 1024 * 1024),
    )(x_bc, ch_bc, w["w_comb"], w["b_enc"], w["whh_t"], w["bhh_n"],
      w["wih_ch_t"], w["b_dec"], w["gpos"], w["wre_t"], w["bre"])

    return out[:BC, :pred_len]


# ---------------------------------------------------------------------------
# One-time weight prep (done once, outside the per-call trace)
# ---------------------------------------------------------------------------
def prepare_weights(p):
    d = D_MODEL
    wih_t = p["wih"].T.astype(jnp.float32)          # (d, 3d)
    whh_t = p["whh"].T.astype(jnp.float32)          # (d, 3d)
    wp_t = p["wp"].T.astype(jnp.float32)            # (PATCH, d)
    w_comb = wp_t @ wih_t                           # fold linear_patch into gi
    # Fold the r/z hidden biases into the (off-chain) input-side bias; only
    # the n-gate hidden bias stays on the recurrence.
    bhh_rz = jnp.concatenate([p["bhh"][:2 * d], jnp.zeros((d,), jnp.float32)])
    b_enc = p["bp"] @ wih_t + p["bih"] + bhh_rz
    b_dec = p["bih"] + bhh_rz
    gpos = p["pos_emb"] @ wih_t[:d // 2]            # pos-part of decoder gi
    return {
        "w_comb": w_comb.astype(jnp.bfloat16),
        "b_enc": b_enc[None].astype(jnp.float32),
        "whh_t": whh_t.astype(jnp.bfloat16),
        "bhh_n": p["bhh"][None, 2 * d:].astype(jnp.float32),
        "wih_ch_t": wih_t[d // 2:].astype(jnp.bfloat16),
        "b_dec": b_dec[None].astype(jnp.float32),
        "gpos": gpos.astype(jnp.float32),
        "wre_t": p["wre"].T.astype(jnp.bfloat16),
        "bre": p["bre"][None].astype(jnp.float32),
        "chan_emb": p["chan_emb"].astype(jnp.bfloat16),
    }


# ---------------------------------------------------------------------------
# Full forward (glue: de-trending, reshapes; dropout = identity in eval)
# ---------------------------------------------------------------------------
@functools.partial(jax.jit, static_argnames=("B", "C", "N", "M"))
def segrnn_forward(x, w, *, B, C, N, M):
    W = PATCH
    seq_last = x[:, -1:, :]                                        # (B,1,C)
    xz = (x - seq_last).astype(jnp.bfloat16)                       # cast pre-transpose
    x_bc = jnp.transpose(xz, (0, 2, 1)).reshape(B * C, N * W)      # (BC,L)
    ch_bc = jnp.tile(w["chan_emb"], (B, 1))                        # (BC,d/2)
    yw = run_segrnn(x_bc, ch_bc, w, M * W)                         # (BC,pred)
    y = yw.reshape(B, C, M * W).transpose(0, 2, 1) + seq_last      # (B,pred,C)
    return y


# ---------------------------------------------------------------------------
# Pure-JAX f32 reference (mirrors PyTorch semantics) for correctness check
# ---------------------------------------------------------------------------
def _gru_cell_ref(x, h, wih, whh, bih, bhh, d):
    gi = x @ wih.T + bih
    gh = h @ whh.T + bhh
    r = jax.nn.sigmoid(gi[:, :d] + gh[:, :d])
    z = jax.nn.sigmoid(gi[:, d:2 * d] + gh[:, d:2 * d])
    n = jnp.tanh(gi[:, 2 * d:] + r * gh[:, 2 * d:])
    return (1.0 - z) * n + z * h


def segrnn_reference(x, p, *, B, C, N, M):
    W, d = PATCH, D_MODEL
    seq_last = x[:, -1:, :]
    xz = x - seq_last
    xw = jnp.transpose(xz, (0, 2, 1)).reshape(B * C, N, W)
    xd = xw @ p["wp"].T + p["bp"]
    h = jnp.zeros((B * C, d), jnp.float32)
    for t in range(N):
        h = _gru_cell_ref(xd[:, t, :], h, p["wih"], p["whh"],
                          p["bih"], p["bhh"], d)
    h_rep = jnp.repeat(h, M, axis=0)
    pos = jnp.tile(p["pos_emb"][None], (B * C, 1, 1))
    ch = jnp.tile(p["chan_emb"][:, None, :], (B, M, 1))
    dec_in = jnp.concatenate([pos, ch], -1).reshape(B * C * M, d)
    h_dec = _gru_cell_ref(dec_in, h_rep, p["wih"], p["whh"],
                          p["bih"], p["bhh"], d)
    yw = h_dec @ p["wre"].T + p["bre"]
    return yw.reshape(B, C, M * W).transpose(0, 2, 1) + seq_last


if __name__ == "__main__":
    # patch_len=16, d_model=256 are fixed by the module.
    configs = [
        dict(B=2, C=4, seq_len=32, pred_len=32),    # BC=8   -> single row-block
        dict(B=3, C=8, seq_len=32, pred_len=32),    # BC=24  -> single padded block
        dict(B=8, C=20, seq_len=32, pred_len=32),   # BC=160 -> tb=128, grid=2 (padded)
    ]
    # TODO(synk): self.lucky embedding & self.relu are unused in the PyTorch
    # forward and are intentionally not materialized.
    key = jax.random.PRNGKey(0)
    for cfg in configs:
        B, C = cfg["B"], cfg["C"]
        seq_len, pred_len = cfg["seq_len"], cfg["pred_len"]
        N, M, d = seq_len // PATCH, pred_len // PATCH, D_MODEL

        key, *ks = jax.random.split(key, 12)
        s = 0.05
        params = {
            "wp":   jax.random.normal(ks[0], (d, PATCH), jnp.float32) * s,
            "bp":   jax.random.normal(ks[1], (d,), jnp.float32) * s,
            "wih":  jax.random.normal(ks[2], (3 * d, d), jnp.float32) * s,
            "whh":  jax.random.normal(ks[3], (3 * d, d), jnp.float32) * s,
            "bih":  jax.random.normal(ks[4], (3 * d,), jnp.float32) * s,
            "bhh":  jax.random.normal(ks[5], (3 * d,), jnp.float32) * s,
            "pos_emb":  jax.random.normal(ks[6], (M, d // 2), jnp.float32),
            "chan_emb": jax.random.normal(ks[7], (C, d // 2), jnp.float32),
            "wre":  jax.random.normal(ks[8], (PATCH, d), jnp.float32) * s,
            "bre":  jax.random.normal(ks[9], (PATCH,), jnp.float32) * s,
        }
        x = jax.random.normal(ks[10], (B, seq_len, C), jnp.float32)

        w = prepare_weights(params)
        y = jax.block_until_ready(segrnn_forward(x, w, B=B, C=C, N=N, M=M))
        assert y.shape == (B, pred_len, C), y.shape

        y_ref = segrnn_reference(x, params, B=B, C=C, N=N, M=M)
        max_err = float(jnp.max(jnp.abs(y - y_ref)))
        assert jnp.allclose(y, y_ref, rtol=2e-2, atol=2e-2), max_err

    print("KERNEL_OK")
</pallas_src>

<mosaic_0001>
module attributes {stable_mosaic.version = 11 : i64} {
  func.func @segrnn_kernel(%arg0: i32, %arg1: memref<8x32xbf16, #tpu.memory_space<vmem>>, %arg2: memref<8x128xbf16, #tpu.memory_space<vmem>>, %arg3: memref<16x768xbf16, #tpu.memory_space<vmem>>, %arg4: memref<1x768xf32, #tpu.memory_space<vmem>>, %arg5: memref<256x768xbf16, #tpu.memory_space<vmem>>, %arg6: memref<1x256xf32, #tpu.memory_space<vmem>>, %arg7: memref<128x768xbf16, #tpu.memory_space<vmem>>, %arg8: memref<1x768xf32, #tpu.memory_space<vmem>>, %arg9: memref<2x768xf32, #tpu.memory_space<vmem>>, %arg10: memref<256x16xbf16, #tpu.memory_space<vmem>>, %arg11: memref<1x16xf32, #tpu.memory_space<vmem>>, %arg12: memref<8x128xf32, #tpu.memory_space<vmem>>) attributes {dimension_semantics = [#tpu.dimension_semantics<parallel>], iteration_bounds = array<i64: 1>, scalar_prefetch = 0 : i64, scratch_operands = 0 : i64, tpu.core_type = #tpu.core_type<tc>, window_params = [{transform_indices = @transform_0, window_bounds = array<i64: 8, 32>}, {transform_indices = @transform_1, window_bounds = array<i64: 8, 128>}, {pipeline_mode = #tpu.pipeline_mode<synchronous>, transform_indices = @transform_2, window_bounds = array<i64: 16, 768>}, {pipeline_mode = #tpu.pipeline_mode<synchronous>, transform_indices = @transform_3, window_bounds = array<i64: 1, 768>}, {pipeline_mode = #tpu.pipeline_mode<synchronous>, transform_indices = @transform_4, window_bounds = array<i64: 256, 768>}, {pipeline_mode = #tpu.pipeline_mode<synchronous>, transform_indices = @transform_5, window_bounds = array<i64: 1, 256>}, {pipeline_mode = #tpu.pipeline_mode<synchronous>, transform_indices = @transform_6, window_bounds = array<i64: 128, 768>}, {pipeline_mode = #tpu.pipeline_mode<synchronous>, transform_indices = @transform_7, window_bounds = array<i64: 1, 768>}, {pipeline_mode = #tpu.pipeline_mode<synchronous>, transform_indices = @transform_8, window_bounds = array<i64: 2, 768>}, {pipeline_mode = #tpu.pipeline_mode<synchronous>, transform_indices = @transform_9, window_bounds = array<i64: 256, 16>}, {pipeline_mode = #tpu.pipeline_mode<synchronous>, transform_indices = @transform_10, window_bounds = array<i64: 1, 16>}, {transform_indices = @transform_11, window_bounds = array<i64: 8, 128>}]} {
    %c0 = arith.constant 0 : index
    %c0_0 = arith.constant 0 : index
    %0 = vector.load %arg3[%c0, %c0_0] : memref<16x768xbf16, #tpu.memory_space<vmem>>, vector<16x768xbf16>
    %c0_1 = arith.constant 0 : index
    %c0_2 = arith.constant 0 : index
    %1 = vector.load %arg4[%c0_1, %c0_2] : memref<1x768xf32, #tpu.memory_space<vmem>>, vector<1x768xf32>
    %c0_3 = arith.constant 0 : index
    %c0_4 = arith.constant 0 : index
    %2 = vector.load %arg5[%c0_3, %c0_4] : memref<256x768xbf16, #tpu.memory_space<vmem>>, vector<256x768xbf16>
    %c0_5 = arith.constant 0 : index
    %c0_6 = arith.constant 0 : index
    %3 = vector.load %arg6[%c0_5, %c0_6] : memref<1x256xf32, #tpu.memory_space<vmem>>, vector<1x256xf32>
    %cst = arith.constant 0.000000e+00 : f32
    %4 = vector.broadcast %cst : f32 to vector<8x256xf32>
    %c0_7 = arith.constant 0 : index
    %c0_8 = arith.constant 0 : index
    %5 = vector.load %arg1[%c0_7, %c0_8] : memref<8x32xbf16, #tpu.memory_space<vmem>>, vector<8x32xbf16>
    %6 = vector.extract_strided_slice %5 {offsets = [0, 0], sizes = [8, 16], strides = [1, 1]} : vector<8x32xbf16> to vector<8x16xbf16>
    %cst_9 = arith.constant dense<0.000000e+00> : vector<8x768xf32>
    %7 = tpu.matmul %6, %0, %cst_9 {dimension_numbers = #tpu.dot_dimension_numbers<[1], [0], [0], [1], [0, 0, 1, 1], [], []>} : vector<8x16xbf16>, vector<16x768xbf16>, vector<8x768xf32> -> vector<8x768xf32>
    %8 = vector.broadcast %1 : vector<1x768xf32> to vector<8x768xf32>
    %9 = arith.addf %7, %8 : vector<8x768xf32>
    %10 = vector.extract_strided_slice %5 {offsets = [0, 16], sizes = [8, 16], strides = [1, 1]} : vector<8x32xbf16> to vector<8x16xbf16>
    %cst_10 = arith.constant dense<0.000000e+00> : vector<8x768xf32>
    %11 = tpu.matmul %10, %0, %cst_10 {dimension_numbers = #tpu.dot_dimension_numbers<[1], [0], [0], [1], [0, 0, 1, 1], [], []>} : vector<8x16xbf16>, vector<16x768xbf16>, vector<8x768xf32> -> vector<8x768xf32>
    %12 = vector.broadcast %1 : vector<1x768xf32> to vector<8x768xf32>
    %13 = arith.addf %11, %12 : vector<8x768xf32>
    %14 = arith.truncf %4 : vector<8x256xf32> to vector<8x256xbf16>
    %cst_11 = arith.constant dense<0.000000e+00> : vector<8x768xf32>
    %15 = tpu.matmul %14, %2, %cst_11 {dimension_numbers = #tpu.dot_dimension_numbers<[1], [0], [0], [1], [0, 0, 1, 1], [], []>} : vector<8x256xbf16>, vector<256x768xbf16>, vector<8x768xf32> -> vector<8x768xf32>
    %16 = vector.extract_strided_slice %9 {offsets = [0, 0], sizes = [8, 256], strides = [1, 1]} : vector<8x768xf32> to vector<8x256xf32>
    %17 = vector.extract_strided_slice %15 {offsets = [0, 0], sizes = [8, 256], strides = [1, 1]} : vector<8x768xf32> to vector<8x256xf32>
    %18 = arith.addf %16, %17 : vector<8x256xf32>
    %19 = arith.negf %18 : vector<8x256xf32>
    %20 = math.exp %19 : vector<8x256xf32>
    %cst_12 = arith.constant 1.000000e+00 : f32
    %21 = vector.broadcast %cst_12 : f32 to vector<8x256xf32>
    %22 = arith.addf %21, %20 : vector<8x256xf32>
    %23 = arith.divf %21, %22 : vector<8x256xf32>
    %24 = vector.extract_strided_slice %9 {offsets = [0, 256], sizes = [8, 256], strides = [1, 1]} : vector<8x768xf32> to vector<8x256xf32>
    %25 = vector.extract_strided_slice %15 {offsets = [0, 256], sizes = [8, 256], strides = [1, 1]} : vector<8x768xf32> to vector<8x256xf32>
    %26 = arith.addf %24, %25 : vector<8x256xf32>
    %27 = arith.negf %26 : vector<8x256xf32>
    %28 = math.exp %27 : vector<8x256xf32>
    %cst_13 = arith.constant 1.000000e+00 : f32
    %29 = vector.broadcast %cst_13 : f32 to vector<8x256xf32>
    %30 = arith.addf %29, %28 : vector<8x256xf32>
    %31 = arith.divf %29, %30 : vector<8x256xf32>
    %32 = vector.extract_strided_slice %9 {offsets = [0, 512], sizes = [8, 256], strides = [1, 1]} : vector<8x768xf32> to vector<8x256xf32>
    %33 = vector.extract_strided_slice %15 {offsets = [0, 512], sizes = [8, 256], strides = [1, 1]} : vector<8x768xf32> to vector<8x256xf32>
    %34 = vector.broadcast %3 : vector<1x256xf32> to vector<8x256xf32>
    %35 = arith.addf %33, %34 : vector<8x256xf32>
    %36 = arith.mulf %23, %35 : vector<8x256xf32>
    %37 = arith.addf %32, %36 : vector<8x256xf32>
    %38 = math.tanh %37 : vector<8x256xf32>
    %39 = arith.subf %4, %38 : vector<8x256xf32>
    %40 = arith.mulf %31, %39 : vector<8x256xf32>
    %41 = arith.addf %38, %40 : vector<8x256xf32>
    %42 = arith.truncf %41 : vector<8x256xf32> to vector<8x256xbf16>
    %cst_14 = arith.constant dense<0.000000e+00> : vector<8x768xf32>
    %43 = tpu.matmul %42, %2, %cst_14 {dimension_numbers = #tpu.dot_dimension_numbers<[1], [0], [0], [1], [0, 0, 1, 1], [], []>} : vector<8x256xbf16>, vector<256x768xbf16>, vector<8x768xf32> -> vector<8x768xf32>
    %44 = vector.extract_strided_slice %13 {offsets = [0, 0], sizes = [8, 256], strides = [1, 1]} : vector<8x768xf32> to vector<8x256xf32>
    %45 = vector.extract_strided_slice %43 {offsets = [0, 0], sizes = [8, 256], strides = [1, 1]} : vector<8x768xf32> to vector<8x256xf32>
    %46 = arith.addf %44, %45 : vector<8x256xf32>
    %47 = arith.negf %46 : vector<8x256xf32>
    %48 = math.exp %47 : vector<8x256xf32>
    %cst_15 = arith.constant 1.000000e+00 : f32
    %49 = vector.broadcast %cst_15 : f32 to vector<8x256xf32>
    %50 = arith.addf %49, %48 : vector<8x256xf32>
    %51 = arith.divf %49, %50 : vector<8x256xf32>
    %52 = vector.extract_strided_slice %13 {offsets = [0, 256], sizes = [8, 256], strides = [1, 1]} : vector<8x768xf32> to vector<8x256xf32>
    %53 = vector.extract_strided_slice %43 {offsets = [0, 256], sizes = [8, 256], strides = [1, 1]} : vector<8x768xf32> to vector<8x256xf32>
    %54 = arith.addf %52, %53 : vector<8x256xf32>
    %55 = arith.negf %54 : vector<8x256xf32>
    %56 = math.exp %55 : vector<8x256xf32>
    %cst_16 = arith.constant 1.000000e+00 : f32
    %57 = vector.broadcast %cst_16 : f32 to vector<8x256xf32>
    %58 = arith.addf %57, %56 : vector<8x256xf32>
    %59 = arith.divf %57, %58 : vector<8x256xf32>
    %60 = vector.extract_strided_slice %13 {offsets = [0, 512], sizes = [8, 256], strides = [1, 1]} : vector<8x768xf32> to vector<8x256xf32>
    %61 = vector.extract_strided_slice %43 {offsets = [0, 512], sizes = [8, 256], strides = [1, 1]} : vector<8x768xf32> to vector<8x256xf32>
    %62 = vector.broadcast %3 : vector<1x256xf32> to vector<8x256xf32>
    %63 = arith.addf %61, %62 : vector<8x256xf32>
    %64 = arith.mulf %51, %63 : vector<8x256xf32>
    %65 = arith.addf %60, %64 : vector<8x256xf32>
    %66 = math.tanh %65 : vector<8x256xf32>
    %67 = arith.subf %41, %66 : vector<8x256xf32>
    %68 = arith.mulf %59, %67 : vector<8x256xf32>
    %69 = arith.addf %66, %68 : vector<8x256xf32>
    %c0_17 = arith.constant 0 : index
    %c0_18 = arith.constant 0 : index
    %70 = vector.load %arg2[%c0_17, %c0_18] : memref<8x128xbf16, #tpu.memory_space<vmem>>, vector<8x128xbf16>
    %c0_19 = arith.constant 0 : index
    %c0_20 = arith.constant 0 : index
    %71 = vector.load %arg7[%c0_19, %c0_20] : memref<128x768xbf16, #tpu.memory_space<vmem>>, vector<128x768xbf16>
    %cst_21 = arith.constant dense<0.000000e+00> : vector<8x768xf32>
    %72 = tpu.matmul %70, %71, %cst_21 {dimension_numbers = #tpu.dot_dimension_numbers<[1], [0], [0], [1], [0, 0, 1, 1], [], []>} : vector<8x128xbf16>, vector<128x768xbf16>, vector<8x768xf32> -> vector<8x768xf32>
    %c0_22 = arith.constant 0 : index
    %c0_23 = arith.constant 0 : index
    %73 = vector.load %arg8[%c0_22, %c0_23] : memref<1x768xf32, #tpu.memory_space<vmem>>, vector<1x768xf32>
    %74 = vector.broadcast %73 : vector<1x768xf32> to vector<8x768xf32>
    %75 = arith.addf %72, %74 : vector<8x768xf32>
    %76 = arith.truncf %69 : vector<8x256xf32> to vector<8x256xbf16>
    %cst_24 = arith.constant dense<0.000000e+00> : vector<8x768xf32>
    %77 = tpu.matmul %76, %2, %cst_24 {dimension_numbers = #tpu.dot_dimension_numbers<[1], [0], [0], [1], [0, 0, 1, 1], [], []>} : vector<8x256xbf16>, vector<256x768xbf16>, vector<8x768xf32> -> vector<8x768xf32>
    %78 = vector.extract_strided_slice %75 {offsets = [0, 0], sizes = [8, 512], strides = [1, 1]} : vector<8x768xf32> to vector<8x512xf32>
    %79 = vector.extract_strided_slice %77 {offsets = [0, 0], sizes = [8, 512], strides = [1, 1]} : vector<8x768xf32> to vector<8x512xf32>
    %80 = arith.addf %78, %79 : vector<8x512xf32>
    %81 = vector.extract_strided_slice %75 {offsets = [0, 512], sizes = [8, 256], strides = [1, 1]} : vector<8x768xf32> to vector<8x256xf32>
    %82 = vector.extract_strided_slice %77 {offsets = [0, 512], sizes = [8, 256], strides = [1, 1]} : vector<8x768xf32> to vector<8x256xf32>
    %83 = vector.broadcast %3 : vector<1x256xf32> to vector<8x256xf32>
    %84 = arith.addf %82, %83 : vector<8x256xf32>
    %c0_25 = arith.constant 0 : index
    %c0_26 = arith.constant 0 : index
    %85 = vector.load %arg9[%c0_25, %c0_26] : memref<2x768xf32, #tpu.memory_space<vmem>>, vector<2x768xf32>
    %c0_27 = arith.constant 0 : index
    %c0_28 = arith.constant 0 : index
    %86 = vector.load %arg10[%c0_27, %c0_28] : memref<256x16xbf16, #tpu.memory_space<vmem>>, vector<256x16xbf16>
    %c0_29 = arith.constant 0 : index
    %c0_30 = arith.constant 0 : index
    %87 = vector.load %arg11[%c0_29, %c0_30] : memref<1x16xf32, #tpu.memory_space<vmem>>, vector<1x16xf32>
    %88 = vector.shape_cast %80 : vector<8x512xf32> to vector<1x8x512xf32>
    %89 = vector.extract_strided_slice %85 {offsets = [0, 0], sizes = [2, 512], strides = [1, 1]} : vector<2x768xf32> to vector<2x512xf32>
    %90 = vector.shape_cast %89 : vector<2x512xf32> to vector<2x1x512xf32>
    %91 = vector.broadcast %88 : vector<1x8x512xf32> to vector<2x8x512xf32>
    %92 = vector.broadcast %90 : vector<2x1x512xf32> to vector<2x8x512xf32>
    %93 = arith.addf %91, %92 : vector<2x8x512xf32>
    %94 = arith.negf %93 : vector<2x8x512xf32>
    %95 = math.exp %94 : vector<2x8x512xf32>
    %cst_31 = arith.constant 1.000000e+00 : f32
    %96 = vector.broadcast %cst_31 : f32 to vector<2x8x512xf32>
    %97 = arith.addf %96, %95 : vector<2x8x512xf32>
    %98 = arith.divf %96, %97 : vector<2x8x512xf32>
    %99 = vector.extract_strided_slice %98 {offsets = [0, 0, 0], sizes = [2, 8, 256], strides = [1, 1, 1]} : vector<2x8x512xf32> to vector<2x8x256xf32>
    %100 = vector.extract_strided_slice %98 {offsets = [0, 0, 256], sizes = [2, 8, 256], strides = [1, 1, 1]} : vector<2x8x512xf32> to vector<2x8x256xf32>
    %101 = vector.shape_cast %81 : vector<8x256xf32> to vector<1x8x256xf32>
    %102 = vector.extract_strided_slice %85 {offsets = [0, 512], sizes = [2, 256], strides = [1, 1]} : vector<2x768xf32> to vector<2x256xf32>
    %103 = vector.shape_cast %102 : vector<2x256xf32> to vector<2x1x256xf32>
    %104 = vector.broadcast %101 : vector<1x8x256xf32> to vector<2x8x256xf32>
    %105 = vector.broadcast %103 : vector<2x1x256xf32> to vector<2x8x256xf32>
    %106 = arith.addf %104, %105 : vector<2x8x256xf32>
    %107 = vector.shape_cast %84 : vector<8x256xf32> to vector<1x8x256xf32>
    %108 = vector.broadcast %107 : vector<1x8x256xf32> to vector<2x8x256xf32>
    %109 = arith.mulf %99, %108 : vector<2x8x256xf32>
    %110 = arith.addf %106, %109 : vector<2x8x256xf32>
    %111 = math.tanh %110 : vector<2x8x256xf32>
    %112 = vector.shape_cast %69 : vector<8x256xf32> to vector<1x8x256xf32>
    %113 = vector.broadcast %112 : vector<1x8x256xf32> to vector<2x8x256xf32>
    %114 = arith.subf %113, %111 : vector<2x8x256xf32>
    %115 = arith.mulf %100, %114 : vector<2x8x256xf32>
    %116 = arith.addf %111, %115 : vector<2x8x256xf32>
    %117 = vector.shape_cast %116 : vector<2x8x256xf32> to vector<16x256xf32>
    %118 = arith.truncf %117 : vector<16x256xf32> to vector<16x256xbf16>
    %cst_32 = arith.constant dense<0.000000e+00> : vector<16x16xf32>
    %119 = tpu.matmul %118, %86, %cst_32 {dimension_numbers = #tpu.dot_dimension_numbers<[1], [0], [0], [1], [0, 0, 1, 1], [], []>} : vector<16x256xbf16>, vector<256x16xbf16>, vector<16x16xf32> -> vector<16x16xf32>
    %120 = vector.broadcast %87 : vector<1x16xf32> to vector<16x16xf32>
    %121 = arith.addf %119, %120 : vector<16x16xf32>
    %122 = vector.extract_strided_slice %121 {offsets = [0, 0], sizes = [8, 16], strides = [1, 1]} : vector<16x16xf32> to vector<8x16xf32>
    %123 = vector.extract_strided_slice %121 {offsets = [8, 0], sizes = [8, 16], strides = [1, 1]} : vector<16x16xf32> to vector<8x16xf32>
    %cst_33 = arith.constant 0.000000e+00 : f32
    %124 = vector.broadcast %cst_33 : f32 to vector<8x96xf32>
    %125 = tpu.concatenate %122, %123, %124 in 1 : vector<8x16xf32>, vector<8x16xf32>, vector<8x96xf32> -> vector<8x128xf32>
    %c0_34 = arith.constant 0 : index
    %c0_35 = arith.constant 0 : index
    %126 = vector.load %arg12[%c0_34, %c0_35] : memref<8x128xf32, #tpu.memory_space<vmem>>, vector<8x128xf32>
    tpu.vector_store %arg12[%c0_34, %c0_35], %125 {strides = array<i32>} : memref<8x128xf32, #tpu.memory_space<vmem>>, vector<8x128xf32>,
    return
  }
  func.func @transform_0(%arg0: i32) -> (i32, i32) {
    %c0_i32 = arith.constant 0 : i32
    %c0_i32_0 = arith.constant 0 : i32
    return %arg0, %c0_i32 : i32, i32
  }
  func.func @transform_1(%arg0: i32) -> (i32, i32) {
    %c0_i32 = arith.constant 0 : i32
    %c0_i32_0 = arith.constant 0 : i32
    return %arg0, %c0_i32 : i32, i32
  }
  func.func @transform_2(%arg0: i32) -> (i32, i32) {
    %c0_i32 = arith.constant 0 : i32
    %c0_i32_0 = arith.constant 0 : i32
    %c0_i32_1 = arith.constant 0 : i32
    return %c0_i32, %c0_i32_0 : i32, i32
  }
  func.func @transform_3(%arg0: i32) -> (i32, i32) {
    %c0_i32 = arith.constant 0 : i32
    %c0_i32_0 = arith.constant 0 : i32
    %c0_i32_1 = arith.constant 0 : i32
    return %c0_i32, %c0_i32_0 : i32, i32
  }
  func.func @transform_4(%arg0: i32) -> (i32, i32) {
    %c0_i32 = arith.constant 0 : i32
    %c0_i32_0 = arith.constant 0 : i32
    %c0_i32_1 = arith.constant 0 : i32
    return %c0_i32, %c0_i32_0 : i32, i32
  }
  func.func @transform_5(%arg0: i32) -> (i32, i32) {
    %c0_i32 = arith.constant 0 : i32
    %c0_i32_0 = arith.constant 0 : i32
    %c0_i32_1 = arith.constant 0 : i32
    return %c0_i32, %c0_i32_0 : i32, i32
  }
  func.func @transform_6(%arg0: i32) -> (i32, i32) {
    %c0_i32 = arith.constant 0 : i32
    %c0_i32_0 = arith.constant 0 : i32
    %c0_i32_1 = arith.constant 0 : i32
    return %c0_i32, %c0_i32_0 : i32, i32
  }
  func.func @transform_7(%arg0: i32) -> (i32, i32) {
    %c0_i32 = arith.constant 0 : i32
    %c0_i32_0 = arith.constant 0 : i32
    %c0_i32_1 = arith.constant 0 : i32
    return %c0_i32, %c0_i32_0 : i32, i32
  }
  func.func @transform_8(%arg0: i32) -> (i32, i32) {
    %c0_i32 = arith.constant 0 : i32
    %c0_i32_0 = arith.constant 0 : i32
    %c0_i32_1 = arith.constant 0 : i32
    return %c0_i32, %c0_i32_0 : i32, i32
  }
  func.func @transform_9(%arg0: i32) -> (i32, i32) {
    %c0_i32 = arith.constant 0 : i32
    %c0_i32_0 = arith.constant 0 : i32
    %c0_i32_1 = arith.constant 0 : i32
    return %c0_i32, %c0_i32_0 : i32, i32
  }
  func.func @transform_10(%arg0: i32) -> (i32, i32) {
    %c0_i32 = arith.constant 0 : i32
    %c0_i32_0 = arith.constant 0 : i32
    %c0_i32_1 = arith.constant 0 : i32
    return %c0_i32, %c0_i32_0 : i32, i32
  }
  func.func @transform_11(%arg0: i32) -> (i32, i32) {
    %c0_i32 = arith.constant 0 : i32
    %c0_i32_0 = arith.constant 0 : i32
    return %arg0, %c0_i32 : i32, i32
  }
}

</mosaic_0001>

<llo_original>
// kernel: segrnn_forward.1
$region0: #{segrnn_forward.1}
  #allocation0 [shape = 'u32[]', space=smem, size = 0x4, offset = 0x4, fixed_abs, tag = 'smem constant byte address 0x4 - core index']
  #allocation1 [shape = 'u32[144,128]{1,0:T(1,128)}', space=vmem, size = 0x12000, scoped, tag = 'internal scratch']
  %s0 = inlined_call_operand.vmem [shape: bf16[8,32], index: 0, kind: input, shape index: {}]
  %s1 = inlined_call_operand.vmem [shape: bf16[8,128], index: 1, kind: input, shape index: {}]
  %s2 = inlined_call_operand.vmem [shape: bf16[16,768], index: 2, kind: input, shape index: {}]
  %s3 = inlined_call_operand.vmem [shape: f32[1,768], index: 3, kind: input, shape index: {}]
  %s4 = inlined_call_operand.hbm [shape: bf16[256,768], index: 4, kind: input, shape index: {}]
  %s5 = inlined_call_operand.vmem [shape: f32[1,256], index: 5, kind: input, shape index: {}]
  %s6 = inlined_call_operand.hbm [shape: bf16[128,768], index: 6, kind: input, shape index: {}]
  %s7 = inlined_call_operand.vmem [shape: f32[1,768], index: 7, kind: input, shape index: {}]
  %s8 = inlined_call_operand.vmem [shape: f32[2,768], index: 8, kind: input, shape index: {}]
  %s9 = inlined_call_operand.vmem [shape: bf16[256,16], index: 9, kind: input, shape index: {}]
  %s10 = inlined_call_operand.vmem [shape: f32[1,16], index: 10, kind: input, shape index: {}]
  %s11 = inlined_call_operand.vmem [shape: f32[8,128], index: 11, kind: output, shape index: {}]
  %s12 = sld [smem:[#allocation0]]
  $region62: #{segrnn_forward.1} parent=0
    _
  %s14 = ssub.s32 1, %s12
  %s15 = scalar_select 0, %s14, %s12
  $region1: #{segrnn_forward.1} parent=0
    #allocation2 [shape = 'u8[393216]{0}', space=vmem, size = 0x60000, scoped, tag = 'input window, operand 4, single buffered']
    #allocation3 [shape = 's32[1]{0}', space=sflag, size = 0x4, scoped, tag = 'scoped memory for segrnn_forward.1']
    #allocation4 [shape = 'u8[196608]{0}', space=vmem, size = 0x30000, scoped, tag = 'input window, operand 6, single buffered']
    #allocation5 [shape = 's32[1]{0}', space=sflag, size = 0x4, scoped, tag = 'scoped memory for segrnn_forward.1']
    %16 = vsyncpa [#allocation3], 0
    %17 = vsyncpa [#allocation5], 0
    // Predicated region
    $region2: #{segrnn_forward.1} parent=1 // pred_check
      _
    $region3: #{segrnn_forward.1} parent=1 // pred_check_branch
      %19 = sbr.rel (0) target = $region5
    $region4: #{segrnn_forward.1} parent=1 // pred_region
      _
    $region5: #{segrnn_forward.1} parent=1 // pred_fallthru
      _
    // Predicated region
    $region6: #{segrnn_forward.1} parent=1 // pred_check
      _
    $region7: #{segrnn_forward.1} parent=1 // pred_check_branch
      %21 = sbr.rel (0) target = $region9
    $region8: #{segrnn_forward.1} parent=1 // pred_region
      _
    $region9: #{segrnn_forward.1} parent=1 // pred_fallthru
      _
    // Predicated region
    $region10: #{segrnn_forward.1} parent=1 // pred_check
      _
    $region11: #{segrnn_forward.1} parent=1 // pred_check_branch
      %23 = sbr.rel (0) target = $region13
    $region12: #{segrnn_forward.1} parent=1 // pred_region
      _
    $region13: #{segrnn_forward.1} parent=1 // pred_fallthru
      _
    // Predicated region
    $region14: #{segrnn_forward.1} parent=1 // pred_check
      _
    $region15: #{segrnn_forward.1} parent=1 // pred_check_branch
      %25 = sbr.rel (0) target = $region17
    $region16: #{segrnn_forward.1} parent=1 // pred_region
      _
    $region17: #{segrnn_forward.1} parent=1 // pred_fallthru
      _
    // Predicated region
    $region18: #{segrnn_forward.1} parent=1 // pred_check
      _
    $region19: #{segrnn_forward.1} parent=1 // pred_check_branch
      %27 = sbr.rel (0) target = $region21
    $region20: #{segrnn_forward.1} parent=1 // pred_region
      %s29 = ssub.s32 12288, 12288
      %30 = vsyncadd [#allocation3], %s29
      %s31 = sshll.u32 [#allocation2], 4
      %s32 = int_to_ptr.vmem [resolvable:$true] %s31
      %37 = dma.hbm_to_vmem [thread:$0]  %s4, 12288, %s32, [#allocation3], 384, 384, 24
    $region21: #{segrnn_forward.1} parent=1 // pred_fallthru
      _
    // Predicated region
    $region22: #{segrnn_forward.1} parent=1 // pred_check
      _
    $region23: #{segrnn_forward.1} parent=1 // pred_check_branch
      %39 = sbr.rel (0) target = $region25
    $region24: #{segrnn_forward.1} parent=1 // pred_region
      _
    $region25: #{segrnn_forward.1} parent=1 // pred_fallthru
      _
    // Predicated region
    $region26: #{segrnn_forward.1} parent=1 // pred_check
      _
    $region27: #{segrnn_forward.1} parent=1 // pred_check_branch
      %41 = sbr.rel (0) target = $region29
    $region28: #{segrnn_forward.1} parent=1 // pred_region
      %s43 = ssub.s32 6144, 6144
      %44 = vsyncadd [#allocation5], %s43
      %s45 = sshll.u32 [#allocation4], 4
      %s46 = int_to_ptr.vmem [resolvable:$true] %s45
      %51 = dma.hbm_to_vmem [thread:$0]  %s6, 6144, %s46, [#allocation5], 384, 384, 24
    $region29: #{segrnn_forward.1} parent=1 // pred_fallthru
      _
    // Predicated region
    $region30: #{segrnn_forward.1} parent=1 // pred_check
      _
    $region31: #{segrnn_forward.1} parent=1 // pred_check_branch
      %53 = sbr.rel (0) target = $region33
    $region32: #{segrnn_forward.1} parent=1 // pred_region
      _
    $region33: #{segrnn_forward.1} parent=1 // pred_fallthru
      _
    // Predicated region
    $region34: #{segrnn_forward.1} parent=1 // pred_check
      _
    $region35: #{segrnn_forward.1} parent=1 // pred_check_branch
      %55 = sbr.rel (0) target = $region37
    $region36: #{segrnn_forward.1} parent=1 // pred_region
      _
    $region37: #{segrnn_forward.1} parent=1 // pred_fallthru
      _
    // Predicated region
    $region38: #{segrnn_forward.1} parent=1 // pred_check
      _
    $region39: #{segrnn_forward.1} parent=1 // pred_check_branch
      %57 = sbr.rel (0) target = $region41
    $region40: #{segrnn_forward.1} parent=1 // pred_region
      _
    $region41: #{segrnn_forward.1} parent=1 // pred_fallthru
      _
    // Predicated region
    $region42: #{segrnn_forward.1} parent=1 // pred_check
      _
    $region43: #{segrnn_forward.1} parent=1 // pred_check_branch
      %59 = sbr.rel (0) target = $region45
    $region44: #{segrnn_forward.1} parent=1 // pred_region
      _
    $region45: #{segrnn_forward.1} parent=1 // pred_fallthru
      _
    // Predicated region
    $region46: #{segrnn_forward.1} parent=1 // pred_check
      _
    $region47: #{segrnn_forward.1} parent=1 // pred_check_branch
      %61 = sbr.rel (0) target = $region49
    $region48: #{segrnn_forward.1} parent=1 // pred_region
      %62 = dma.done [#allocation3], 12288
    $region49: #{segrnn_forward.1} parent=1 // pred_fallthru
      _
    // Predicated region
    $region50: #{segrnn_forward.1} parent=1 // pred_check
      _
    $region51: #{segrnn_forward.1} parent=1 // pred_check_branch
      %64 = sbr.rel (0) target = $region53
    $region52: #{segrnn_forward.1} parent=1 // pred_region
      %65 = dma.done [#allocation5], 6144
    $region53: #{segrnn_forward.1} parent=1 // pred_fallthru
      _
    %v67 = vld [vmem:[%s2] sm:$0xff]
    %v68 = vld [vmem:[%s2 + $0x8] sm:$0xff]
    %v69 = vld [vmem:[%s2 + $0x10] sm:$0xff]
    %v70 = vld [vmem:[%s2 + $0x18] sm:$0xff]
    %v71 = vld [vmem:[%s2 + $0x20] sm:$0xff]
    %v72 = vld [vmem:[%s2 + $0x28] sm:$0xff]
    %v73 = vld [vmem:[%s3] sm:$0x3f]
    %v74 = vld [vmem:[#allocation2] sm:$0xff]
    %v75 = vld [vmem:[#allocation2 + $0x8] sm:$0xff]
    %v76 = vld [vmem:[#allocation2 + $0x10] sm:$0xff]
    %v77 = vld [vmem:[#allocation2 + $0x18] sm:$0xff]
    %v78 = vld [vmem:[#allocation2 + $0x20] sm:$0xff]
    %v79 = vld [vmem:[#allocation2 + $0x28] sm:$0xff]
    %v80 = vld [vmem:[#allocation2 + $0x30] sm:$0xff]
    %v81 = vld [vmem:[#allocation2 + $0x38] sm:$0xff]
    %v82 = vld [vmem:[#allocation2 + $0x40] sm:$0xff]
    %v83 = vld [vmem:[#allocation2 + $0x48] sm:$0xff]
    %v84 = vld [vmem:[#allocation2 + $0x50] sm:$0xff]
    %v85 = vld [vmem:[#allocation2 + $0x58] sm:$0xff]
    %v86 = vld [vmem:[#allocation2 + $0x60] sm:$0xff]
    %v87 = vld [vmem:[#allocation2 + $0x68] sm:$0xff]
    %v88 = vld [vmem:[#allocation2 + $0x70] sm:$0xff]
    %v89 = vld [vmem:[#allocation2 + $0x78] sm:$0xff]
    %v90 = vld [vmem:[#allocation2 + $0x80] sm:$0xff]
    %v91 = vld [vmem:[#allocation2 + $0x88] sm:$0xff]
    %v92 = vld [vmem:[#allocation2 + $0x90] sm:$0xff]
    %v93 = vld [vmem:[#allocation2 + $0x98] sm:$0xff]
    %v94 = vld [vmem:[#allocation2 + $0xa0] sm:$0xff]
    %v95 = vld [vmem:[#allocation2 + $0xa8] sm:$0xff]
    %v96 = vld [vmem:[#allocation2 + $0xb0] sm:$0xff]
    %v97 = vld [vmem:[#allocation2 + $0xb8] sm:$0xff]
    %v98 = vld [vmem:[#allocation2 + $0xc0] sm:$0xff]
    %v99 = vld [vmem:[#allocation2 + $0xc8] sm:$0xff]
    %v100 = vld [vmem:[#allocation2 + $0xd0] sm:$0xff]
    %v101 = vld [vmem:[#allocation2 + $0xd8] sm:$0xff]
    %v102 = vld [vmem:[#allocation2 + $0xe0] sm:$0xff]
    %v103 = vld [vmem:[#allocation2 + $0xe8] sm:$0xff]
    %v104 = vld [vmem:[#allocation2 + $0xf0] sm:$0xff]
    %v105 = vld [vmem:[#allocation2 + $0xf8] sm:$0xff]
    %v106 = vld [vmem:[#allocation2 + $0x100] sm:$0xff]
    %v107 = vld [vmem:[#allocation2 + $0x108] sm:$0xff]
    %v108 = vld [vmem:[#allocation2 + $0x110] sm:$0xff]
    %v109 = vld [vmem:[#allocation2 + $0x118] sm:$0xff]
    %v110 = vld [vmem:[#allocation2 + $0x120] sm:$0xff]
    %v111 = vld [vmem:[#allocation2 + $0x128] sm:$0xff]
    %v112 = vld [vmem:[#allocation2 + $0x130] sm:$0xff]
    %v113 = vld [vmem:[#allocation2 + $0x138] sm:$0xff]
    %v114 = vld [vmem:[#allocation2 + $0x140] sm:$0xff]
    %v115 = vld [vmem:[#allocation2 + $0x148] sm:$0xff]
    %v116 = vld [vmem:[#allocation2 + $0x150] sm:$0xff]
    %v117 = vld [vmem:[#allocation2 + $0x158] sm:$0xff]
    %v118 = vld [vmem:[#allocation2 + $0x160] sm:$0xff]
    %v119 = vld [vmem:[#allocation2 + $0x168] sm:$0xff]
    %v120 = vld [vmem:[#allocation2 + $0x170] sm:$0xff]
    %v121 = vld [vmem:[#allocation2 + $0x178] sm:$0xff]
    %v122 = vld [vmem:[#allocation2 + $0x180] sm:$0xff]
    %v123 = vld [vmem:[#allocation2 + $0x188] sm:$0xff]
    %v124 = vld [vmem:[#allocation2 + $0x190] sm:$0xff]
    %v125 = vld [vmem:[#allocation2 + $0x198] sm:$0xff]
    %v126 = vld [vmem:[#allocation2 + $0x1a0] sm:$0xff]
    %v127 = vld [vmem:[#allocation2 + $0x1a8] sm:$0xff]
    %v128 = vld [vmem:[#allocation2 + $0x1b0] sm:$0xff]
    %v129 = vld [vmem:[#allocation2 + $0x1b8] sm:$0xff]
    %v130 = vld [vmem:[#allocation2 + $0x1c0] sm:$0xff]
    %v131 = vld [vmem:[#allocation2 + $0x1c8] sm:$0xff]
    %v132 = vld [vmem:[#allocation2 + $0x1d0] sm:$0xff]
    %v133 = vld [vmem:[#allocation2 + $0x1d8] sm:$0xff]
    %v134 = vld [vmem:[#allocation2 + $0x1e0] sm:$0xff]
    %v135 = vld [vmem:[#allocation2 + $0x1e8] sm:$0xff]
    %v136 = vld [vmem:[#allocation2 + $0x1f0] sm:$0xff]
    %v137 = vld [vmem:[#allocation2 + $0x1f8] sm:$0xff]
    %v138 = vld [vmem:[#allocation2 + $0x200] sm:$0xff]
    %v139 = vld [vmem:[#allocation2 + $0x208] sm:$0xff]
    %v140 = vld [vmem:[#allocation2 + $0x210] sm:$0xff]
    %v141 = vld [vmem:[#allocation2 + $0x218] sm:$0xff]
    %v142 = vld [vmem:[#allocation2 + $0x220] sm:$0xff]
    %v143 = vld [vmem:[#allocation2 + $0x228] sm:$0xff]
    %v144 = vld [vmem:[#allocation2 + $0x230] sm:$0xff]
    %v145 = vld [vmem:[#allocation2 + $0x238] sm:$0xff]
    %v146 = vld [vmem:[#allocation2 + $0x240] sm:$0xff]
    %v147 = vld [vmem:[#allocation2 + $0x248] sm:$0xff]
    %v148 = vld [vmem:[#allocation2 + $0x250] sm:$0xff]
    %v149 = vld [vmem:[#allocation2 + $0x258] sm:$0xff]
    %v150 = vld [vmem:[#allocation2 + $0x260] sm:$0xff]
    %v151 = vld [vmem:[#allocation2 + $0x268] sm:$0xff]
    %v152 = vld [vmem:[#allocation2 + $0x270] sm:$0xff]
    %v153 = vld [vmem:[#allocation2 + $0x278] sm:$0xff]
    %v154 = vld [vmem:[#allocation2 + $0x280] sm:$0xff]
    %v155 = vld [vmem:[#allocation2 + $0x288] sm:$0xff]
    %v156 = vld [vmem:[#allocation2 + $0x290] sm:$0xff]
    %v157 = vld [vmem:[#allocation2 + $0x298] sm:$0xff]
    %v158 = vld [vmem:[#allocation2 + $0x2a0] sm:$0xff]
    %v159 = vld [vmem:[#allocation2 + $0x2a8] sm:$0xff]
    %v160 = vld [vmem:[#allocation2 + $0x2b0] sm:$0xff]
    %v161 = vld [vmem:[#allocation2 + $0x2b8] sm:$0xff]
    %v162 = vld [vmem:[#allocation2 + $0x2c0] sm:$0xff]
    %v163 = vld [vmem:[#allocation2 + $0x2c8] sm:$0xff]
    %v164 = vld [vmem:[#allocation2 + $0x2d0] sm:$0xff]
    %v165 = vld [vmem:[#allocation2 + $0x2d8] sm:$0xff]
    %v166 = vld [vmem:[#allocation2 + $0x2e0] sm:$0xff]
    %v167 = vld [vmem:[#allocation2 + $0x2e8] sm:$0xff]
    %v168 = vld [vmem:[#allocation2 + $0x2f0] sm:$0xff]
    %v169 = vld [vmem:[#allocation2 + $0x2f8] sm:$0xff]
    %v170 = vld [vmem:[%s5] sm:$0x3]
    %v171 = vld [vmem:[%s0] sm:$0xf]
    %v173 = vlaneseq
    %v174 = vshrl.u32 %v173, 7
    %v175 = vsub.s32 0, %v174
    %v176 = vrot.slane %v73, %v175
    %v177 = vlaneseq
    %v178 = vshrl.u32 %v177, 7
    %v179 = vsub.s32 1, %v178
    %v180 = vrot.slane %v73, %v179
    %v181 = vlaneseq
    %v182 = vshrl.u32 %v181, 7
    %v183 = vsub.s32 2, %v182
    %v184 = vrot.slane %v73, %v183
    %v185 = vlaneseq
    %v186 = vshrl.u32 %v185, 7
    %v187 = vsub.s32 3, %v186
    %v188 = vrot.slane %v73, %v187
    %v189 = vlaneseq
    %v190 = vshrl.u32 %v189, 7
    %v191 = vsub.s32 4, %v190
    %v192 = vrot.slane %v73, %v191
    %v193 = vlaneseq
    %v194 = vshrl.u32 %v193, 7
    %v195 = vsub.s32 5, %v194
    %v196 = vrot.slane %v73, %v195
    %v209 = vunpack.c.l.b16 %v67
    %v210 = vunpack.c.h.b16 %v67
    %v211 = vunpack.c.l.b16 %v68
    %v212 = vunpack.c.h.b16 %v68
    %v213 = vunpack.c.l.b16 %v69
    %v214 = vunpack.c.h.b16 %v69
    %v215 = vunpack.c.l.b16 %v70
    %v216 = vunpack.c.h.b16 %v70
    %v217 = vunpack.c.l.b16 %v71
    %v218 = vunpack.c.h.b16 %v71
    %v219 = vunpack.c.l.b16 %v72
    %v220 = vunpack.c.h.b16 %v72
    %v221 = vpack.c.b16 %v215, %v209
    %v222 = vpack.c.b16 %v216, %v210
    %v223 = vpack.c.b16 %v217, %v211
    %v224 = vpack.c.b16 %v218, %v212
    %v225 = vpack.c.b16 %v219, %v213
    %v226 = vpack.c.b16 %v220, %v214
    %vm233 = vcmask 130048
    %v235 = vsel %vm233, %v171, 0
    %237 = vmatprep.subr.bf16.mxu0 %v222
    %238 = vmatpush1.bf16.msra.mxu0 %v221
    %239 = vmatprep.subr.bf16.mxu0 0
    %240 = vmatpush1.bf16.msra.mxu0 0
    %241 = vmatprep.subr.bf16.mxu0 0
    %242 = vmatpush1.bf16.msra.mxu0 0
    %243 = vmatprep.subr.bf16.mxu0 0
    %244 = vmatpush1.bf16.msra.mxu0 0
    %245 = vmatprep.subr.bf16.mxu0 0
    %246 = vmatpush1.bf16.msra.mxu0 0
    %247 = vmatprep.subr.bf16.mxu0 0
    %248 = vmatpush1.bf16.msra.mxu0 0
    %249 = vmatprep.subr.bf16.mxu0 0
    %250 = vmatpush1.bf16.msra.mxu0 0
    %251 = vmatprep.subr.bf16.mxu0 0
    %252 = vmatpush1.bf16.msra.mxu0 0
    %253 = vmatprep.subr.bf16.mxu0 0
    %254 = vmatpush1.bf16.msra.mxu0 0
    %255 = vmatprep.subr.bf16.mxu0 0
    %256 = vmatpush1.bf16.msra.mxu0 0
    %257 = vmatprep.subr.bf16.mxu0 0
    %258 = vmatpush1.bf16.msra.mxu0 0
    %259 = vmatprep.subr.bf16.mxu0 0
    %260 = vmatpush1.bf16.msra.mxu0 0
    %261 = vmatprep.subr.bf16.mxu0 0
    %262 = vmatpush1.bf16.msra.mxu0 0
    %263 = vmatprep.subr.bf16.mxu0 0
    %264 = vmatpush1.bf16.msra.mxu0 0
    %265 = vmatprep.subr.bf16.mxu0 0
    %266 = vmatpush1.bf16.msra.mxu0 0
    %267 = vmatprep.subr.bf16.mxu0 0
    %268 = vmatpush1.bf16.msra.mxu0 0
    %269 = vmatprep.mubr.bf16.mxu0 0
    %270 = vmatmul.mubr.bf16.gmra.mrb[0].mxu0 %v235
    %v271 = vpop.f32.mrb[0].mxu0
    %v272 = vadd.f32 %v176, %v271
    %v273 = vpop.f32.mrb[0].mxu0
    %v274 = vadd.f32 %v180, %v273
    %v275 = vpop.f32.mrb[0].mxu0
    %v276 = vpop.f32.mrb[0].mxu0
    %277 = vdwg.mxu0
    %278 = vmatprep.subr.bf16.mxu0 %v224
    %279 = vmatpush1.bf16.msra.mxu0 %v223
    %280 = vmatprep.subr.bf16.mxu0 0
    %281 = vmatpush1.bf16.msra.mxu0 0
    %282 = vmatprep.subr.bf16.mxu0 0
    %283 = vmatpush1.bf16.msra.mxu0 0
    %284 = vmatprep.subr.bf16.mxu0 0
    %285 = vmatpush1.bf16.msra.mxu0 0
    %286 = vmatprep.subr.bf16.mxu0 0
    %287 = vmatpush1.bf16.msra.mxu0 0
    %288 = vmatprep.subr.bf16.mxu0 0
    %289 = vmatpush1.bf16.msra.mxu0 0
    %290 = vmatprep.subr.bf16.mxu0 0
    %291 = vmatpush1.bf16.msra.mxu0 0
    %292 = vmatprep.subr.bf16.mxu0 0
    %293 = vmatpush1.bf16.msra.mxu0 0
    %294 = vmatprep.subr.bf16.mxu0 0
    %295 = vmatpush1.bf16.msra.mxu0 0
    %296 = vmatprep.subr.bf16.mxu0 0
    %297 = vmatpush1.bf16.msra.mxu0 0
    %298 = vmatprep.subr.bf16.mxu0 0
    %299 = vmatpush1.bf16.msra.mxu0 0
    %300 = vmatprep.subr.bf16.mxu0 0
    %301 = vmatpush1.bf16.msra.mxu0 0
    %302 = vmatprep.subr.bf16.mxu0 0
    %303 = vmatpush1.bf16.msra.mxu0 0
    %304 = vmatprep.subr.bf16.mxu0 0
    %305 = vmatpush1.bf16.msra.mxu0 0
    %306 = vmatprep.subr.bf16.mxu0 0
    %307 = vmatpush1.bf16.msra.mxu0 0
    %308 = vmatprep.subr.bf16.mxu0 0
    %309 = vmatpush1.bf16.msra.mxu0 0
    %310 = vmatprep.mubr.bf16.mxu0 0
    %311 = vmatmul.mubr.bf16.gmra.mrb[0].mxu0 %v235
    %v312 = vpop.f32.mrb[0].mxu0
    %v313 = vadd.f32 %v184, %v312
    %v314 = vpop.f32.mrb[0].mxu0
    %v315 = vadd.f32 %v188, %v314
    %v316 = vpop.f32.mrb[0].mxu0
    %v317 = vpop.f32.mrb[0].mxu0
    %318 = vdwg.mxu0
    %319 = vmatprep.subr.bf16.mxu0 %v226
    %320 = vmatpush1.bf16.msra.mxu0 %v225
    %321 = vmatprep.subr.bf16.mxu0 0
    %322 = vmatpush1.bf16.msra.mxu0 0
    %323 = vmatprep.subr.bf16.mxu0 0
    %324 = vmatpush1.bf16.msra.mxu0 0
    %325 = vmatprep.subr.bf16.mxu0 0
    %326 = vmatpush1.bf16.msra.mxu0 0
    %327 = vmatprep.subr.bf16.mxu0 0
    %328 = vmatpush1.bf16.msra.mxu0 0
    %329 = vmatprep.subr.bf16.mxu0 0
    %330 = vmatpush1.bf16.msra.mxu0 0
    %331 = vmatprep.subr.bf16.mxu0 0
    %332 = vmatpush1.bf16.msra.mxu0 0
    %333 = vmatprep.subr.bf16.mxu0 0
    %334 = vmatpush1.bf16.msra.mxu0 0
    %335 = vmatprep.subr.bf16.mxu0 0
    %336 = vmatpush1.bf16.msra.mxu0 0
    %337 = vmatprep.subr.bf16.mxu0 0
    %338 = vmatpush1.bf16.msra.mxu0 0
    %339 = vmatprep.subr.bf16.mxu0 0
    %340 = vmatpush1.bf16.msra.mxu0 0
    %341 = vmatprep.subr.bf16.mxu0 0
    %342 = vmatpush1.bf16.msra.mxu0 0
    %343 = vmatprep.subr.bf16.mxu0 0
    %344 = vmatpush1.bf16.msra.mxu0 0
    %345 = vmatprep.subr.bf16.mxu0 0
    %346 = vmatpush1.bf16.msra.mxu0 0
    %347 = vmatprep.subr.bf16.mxu0 0
    %348 = vmatpush1.bf16.msra.mxu0 0
    %349 = vmatprep.subr.bf16.mxu0 0
    %350 = vmatpush1.bf16.msra.mxu0 0
    %351 = vmatprep.mubr.bf16.mxu0 0
    %352 = vmatmul.mubr.bf16.gmra.mrb[0].mxu0 %v235
    %v353 = vpop.f32.mrb[0].mxu0
    %v354 = vadd.f32 %v192, %v353
    %v355 = vpop.f32.mrb[0].mxu0
    %v356 = vadd.f32 %v196, %v355
    %v357 = vpop.f32.mrb[0].mxu0
    %v358 = vpop.f32.mrb[0].mxu0
    %359 = vdwg.mxu0
    %v361 = vunpack.c.l.b16 %v171
    %v362 = vpack.c.b16 %v361, %v361
    %363 = vrot.lane.b32.xlu0 %v362, 112
    %v364 = vpop.permute.xlu0 %363
    %v366 = vsel %vm233, %v364, 0
    %368 = vmatprep.subr.bf16.mxu0 %v222
    %369 = vmatpush1.bf16.msra.mxu0 %v221
    %370 = vmatprep.subr.bf16.mxu0 0
    %371 = vmatpush1.bf16.msra.mxu0 0
    %372 = vmatprep.subr.bf16.mxu0 0
    %373 = vmatpush1.bf16.msra.mxu0 0
    %374 = vmatprep.subr.bf16.mxu0 0
    %375 = vmatpush1.bf16.msra.mxu0 0
    %376 = vmatprep.subr.bf16.mxu0 0
    %377 = vmatpush1.bf16.msra.mxu0 0
    %378 = vmatprep.subr.bf16.mxu0 0
    %379 = vmatpush1.bf16.msra.mxu0 0
    %380 = vmatprep.subr.bf16.mxu0 0
    %381 = vmatpush1.bf16.msra.mxu0 0
    %382 = vmatprep.subr.bf16.mxu0 0
    %383 = vmatpush1.bf16.msra.mxu0 0
    %384 = vmatprep.subr.bf16.mxu0 0
    %385 = vmatpush1.bf16.msra.mxu0 0
    %386 = vmatprep.subr.bf16.mxu0 0
    %387 = vmatpush1.bf16.msra.mxu0 0
    %388 = vmatprep.subr.bf16.mxu0 0
    %389 = vmatpush1.bf16.msra.mxu0 0
    %390 = vmatprep.subr.bf16.mxu0 0
    %391 = vmatpush1.bf16.msra.mxu0 0
    %392 = vmatprep.subr.bf16.mxu0 0
    %393 = vmatpush1.bf16.msra.mxu0 0
    %394 = vmatprep.subr.bf16.mxu0 0
    %395 = vmatpush1.bf16.msra.mxu0 0
    %396 = vmatprep.subr.bf16.mxu0 0
    %397 = vmatpush1.bf16.msra.mxu0 0
    %398 = vmatprep.subr.bf16.mxu0 0
    %399 = vmatpush1.bf16.msra.mxu0 0
    %400 = vmatprep.mubr.bf16.mxu0 0
    %401 = vmatmul.mubr.bf16.gmra.mrb[0].mxu0 %v366
    %v402 = vpop.f32.mrb[0].mxu0
    %v403 = vadd.f32 %v176, %v402
    %v404 = vpop.f32.mrb[0].mxu0
    %v405 = vadd.f32 %v180, %v404
    %v406 = vpop.f32.mrb[0].mxu0
    %v407 = vpop.f32.mrb[0].mxu0
    %408 = vdwg.mxu0
    %409 = vmatprep.subr.bf16.mxu0 %v224
    %410 = vmatpush1.bf16.msra.mxu0 %v223
    %411 = vmatprep.subr.bf16.mxu0 0
    %412 = vmatpush1.bf16.msra.mxu0 0
    %413 = vmatprep.subr.bf16.mxu0 0
    %414 = vmatpush1.bf16.msra.mxu0 0
    %415 = vmatprep.subr.bf16.mxu0 0
    %416 = vmatpush1.bf16.msra.mxu0 0
    %417 = vmatprep.subr.bf16.mxu0 0
    %418 = vmatpush1.bf16.msra.mxu0 0
    %419 = vmatprep.subr.bf16.mxu0 0
    %420 = vmatpush1.bf16.msra.mxu0 0
    %421 = vmatprep.subr.bf16.mxu0 0
    %422 = vmatpush1.bf16.msra.mxu0 0
    %423 = vmatprep.subr.bf16.mxu0 0
    %424 = vmatpush1.bf16.msra.mxu0 0
    %425 = vmatprep.subr.bf16.mxu0 0
    %426 = vmatpush1.bf16.msra.mxu0 0
    %427 = vmatprep.subr.bf16.mxu0 0
    %428 = vmatpush1.bf16.msra.mxu0 0
    %429 = vmatprep.subr.bf16.mxu0 0
    %430 = vmatpush1.bf16.msra.mxu0 0
    %431 = vmatprep.subr.bf16.mxu0 0
    %432 = vmatpush1.bf16.msra.mxu0 0
    %433 = vmatprep.subr.bf16.mxu0 0
    %434 = vmatpush1.bf16.msra.mxu0 0
    %435 = vmatprep.subr.bf16.mxu0 0
    %436 = vmatpush1.bf16.msra.mxu0 0
    %437 = vmatprep.subr.bf16.mxu0 0
    %438 = vmatpush1.bf16.msra.mxu0 0
    %439 = vmatprep.subr.bf16.mxu0 0
    %440 = vmatpush1.bf16.msra.mxu0 0
    %441 = vmatprep.mubr.bf16.mxu0 0
    %442 = vmatmul.mubr.bf16.gmra.mrb[0].mxu0 %v366
    %v443 = vpop.f32.mrb[0].mxu0
    %v444 = vadd.f32 %v184, %v443
    %v445 = vpop.f32.mrb[0].mxu0
    %v446 = vadd.f32 %v188, %v445
    %v447 = vpop.f32.mrb[0].mxu0
    %v448 = vpop.f32.mrb[0].mxu0
    %449 = vdwg.mxu0
    %450 = vmatprep.subr.bf16.mxu0 %v226
    %451 = vmatpush1.bf16.msra.mxu0 %v225
    %452 = vmatprep.subr.bf16.mxu0 0
    %453 = vmatpush1.bf16.msra.mxu0 0
    %454 = vmatprep.subr.bf16.mxu0 0
    %455 = vmatpush1.bf16.msra.mxu0 0
    %456 = vmatprep.subr.bf16.mxu0 0
    %457 = vmatpush1.bf16.msra.mxu0 0
    %458 = vmatprep.subr.bf16.mxu0 0
    %459 = vmatpush1.bf16.msra.mxu0 0
    %460 = vmatprep.subr.bf16.mxu0 0
    %461 = vmatpush1.bf16.msra.mxu0 0
    %462 = vmatprep.subr.bf16.mxu0 0
    %463 = vmatpush1.bf16.msra.mxu0 0
    %464 = vmatprep.subr.bf16.mxu0 0
    %465 = vmatpush1.bf16.msra.mxu0 0
    %466 = vmatprep.subr.bf16.mxu0 0
    %467 = vmatpush1.bf16.msra.mxu0 0
    %468 = vmatprep.subr.bf16.mxu0 0
    %469 = vmatpush1.bf16.msra.mxu0 0
    %470 = vmatprep.subr.bf16.mxu0 0
    %471 = vmatpush1.bf16.msra.mxu0 0
    %472 = vmatprep.subr.bf16.mxu0 0
    %473 = vmatpush1.bf16.msra.mxu0 0
    %474 = vmatprep.subr.bf16.mxu0 0
    %475 = vmatpush1.bf16.msra.mxu0 0
    %476 = vmatprep.subr.bf16.mxu0 0
    %477 = vmatpush1.bf16.msra.mxu0 0
    %478 = vmatprep.subr.bf16.mxu0 0
    %479 = vmatpush1.bf16.msra.mxu0 0
    %480 = vmatprep.subr.bf16.mxu0 0
    %481 = vmatpush1.bf16.msra.mxu0 0
    %482 = vmatprep.mubr.bf16.mxu0 0
    %483 = vmatmul.mubr.bf16.gmra.mrb[0].mxu0 %v366
    %v484 = vpop.f32.mrb[0].mxu0
    %v485 = vadd.f32 %v192, %v484
    %v486 = vpop.f32.mrb[0].mxu0
    %v487 = vadd.f32 %v196, %v486
    %v488 = vpop.f32.mrb[0].mxu0
    %v489 = vpop.f32.mrb[0].mxu0
    %490 = vdwg.mxu0
    %v587 = vunpack.c.l.b16 %v74
    %v588 = vunpack.c.h.b16 %v74
    %v589 = vunpack.c.l.b16 %v75
    %v590 = vunpack.c.h.b16 %v75
    %v591 = vunpack.c.l.b16 %v76
    %v592 = vunpack.c.h.b16 %v76
    %v593 = vunpack.c.l.b16 %v77
    %v594 = vunpack.c.h.b16 %v77
    %v595 = vunpack.c.l.b16 %v78
    %v596 = vunpack.c.h.b16 %v78
    %v597 = vunpack.c.l.b16 %v79
    %v598 = vunpack.c.h.b16 %v79
    %v599 = vunpack.c.l.b16 %v80
    %v600 = vunpack.c.h.b16 %v80
    %v601 = vunpack.c.l.b16 %v81
    %v602 = vunpack.c.h.b16 %v81
    %v603 = vunpack.c.l.b16 %v82
    %v604 = vunpack.c.h.b16 %v82
    %v605 = vunpack.c.l.b16 %v83
    %v606 = vunpack.c.h.b16 %v83
    %v607 = vunpack.c.l.b16 %v84
    %v608 = vunpack.c.h.b16 %v84
    %v609 = vunpack.c.l.b16 %v85
    %v610 = vunpack.c.h.b16 %v85
    %v611 = vunpack.c.l.b16 %v86
    %v612 = vunpack.c.h.b16 %v86
    %v613 = vunpack.c.l.b16 %v87
    %v614 = vunpack.c.h.b16 %v87
    %v615 = vunpack.c.l.b16 %v88
    %v616 = vunpack.c.h.b16 %v88
    %v617 = vunpack.c.l.b16 %v89
    %v618 = vunpack.c.h.b16 %v89
    %v619 = vunpack.c.l.b16 %v90
    %v620 = vunpack.c.h.b16 %v90
    %v621 = vunpack.c.l.b16 %v91
    %v622 = vunpack.c.h.b16 %v91
    %v623 = vunpack.c.l.b16 %v92
    %v624 = vunpack.c.h.b16 %v92
    %v625 = vunpack.c.l.b16 %v93
    %v626 = vunpack.c.h.b16 %v93
    %v627 = vunpack.c.l.b16 %v94
    %v628 = vunpack.c.h.b16 %v94
    %v629 = vunpack.c.l.b16 %v95
    %v630 = vunpack.c.h.b16 %v95
    %v631 = vunpack.c.l.b16 %v96
    %v632 = vunpack.c.h.b16 %v96
    %v633 = vunpack.c.l.b16 %v97
    %v634 = vunpack.c.h.b16 %v97
    %v635 = vunpack.c.l.b16 %v98
    %v636 = vunpack.c.h.b16 %v98
    %v637 = vunpack.c.l.b16 %v99
    %v638 = vunpack.c.h.b16 %v99
    %v639 = vunpack.c.l.b16 %v100
    %v640 = vunpack.c.h.b16 %v100
    %v641 = vunpack.c.l.b16 %v101
    %v642 = vunpack.c.h.b16 %v101
    %v643 = vunpack.c.l.b16 %v102
    %v644 = vunpack.c.h.b16 %v102
    %v645 = vunpack.c.l.b16 %v103
    %v646 = vunpack.c.h.b16 %v103
    %v647 = vunpack.c.l.b16 %v104
    %v648 = vunpack.c.h.b16 %v104
    %v649 = vunpack.c.l.b16 %v105
    %v650 = vunpack.c.h.b16 %v105
    %v651 = vunpack.c.l.b16 %v106
    %v652 = vunpack.c.h.b16 %v106
    %v653 = vunpack.c.l.b16 %v107
    %v654 = vunpack.c.h.b16 %v107
    %v655 = vunpack.c.l.b16 %v108
    %v656 = vunpack.c.h.b16 %v108
    %v657 = vunpack.c.l.b16 %v109
    %v658 = vunpack.c.h.b16 %v109
    %v659 = vunpack.c.l.b16 %v110
    %v660 = vunpack.c.h.b16 %v110
    %v661 = vunpack.c.l.b16 %v111
    %v662 = vunpack.c.h.b16 %v111
    %v663 = vunpack.c.l.b16 %v112
    %v664 = vunpack.c.h.b16 %v112
    %v665 = vunpack.c.l.b16 %v113
    %v666 = vunpack.c.h.b16 %v113
    %v667 = vunpack.c.l.b16 %v114
    %v668 = vunpack.c.h.b16 %v114
    %v669 = vunpack.c.l.b16 %v115
    %v670 = vunpack.c.h.b16 %v115
    %v671 = vunpack.c.l.b16 %v116
    %v672 = vunpack.c.h.b16 %v116
    %v673 = vunpack.c.l.b16 %v117
    %v674 = vunpack.c.h.b16 %v117
    %v675 = vunpack.c.l.b16 %v118
    %v676 = vunpack.c.h.b16 %v118
    %v677 = vunpack.c.l.b16 %v119
    %v678 = vunpack.c.h.b16 %v119
    %v679 = vunpack.c.l.b16 %v120
    %v680 = vunpack.c.h.b16 %v120
    %v681 = vunpack.c.l.b16 %v121
    %v682 = vunpack.c.h.b16 %v121
    %v683 = vunpack.c.l.b16 %v122
    %v684 = vunpack.c.h.b16 %v122
    %v685 = vunpack.c.l.b16 %v123
    %v686 = vunpack.c.h.b16 %v123
    %v687 = vunpack.c.l.b16 %v124
    %v688 = vunpack.c.h.b16 %v124
    %v689 = vunpack.c.l.b16 %v125
    %v690 = vunpack.c.h.b16 %v125
    %v691 = vunpack.c.l.b16 %v126
    %v692 = vunpack.c.h.b16 %v126
    %v693 = vunpack.c.l.b16 %v127
    %v694 = vunpack.c.h.b16 %v127
    %v695 = vunpack.c.l.b16 %v128
    %v696 = vunpack.c.h.b16 %v128
    %v697 = vunpack.c.l.b16 %v129
    %v698 = vunpack.c.h.b16 %v129
    %v699 = vunpack.c.l.b16 %v130
    %v700 = vunpack.c.h.b16 %v130
    %v701 = vunpack.c.l.b16 %v131
    %v702 = vunpack.c.h.b16 %v131
    %v703 = vunpack.c.l.b16 %v132
    %v704 = vunpack.c.h.b16 %v132
    %v705 = vunpack.c.l.b16 %v133
    %v706 = vunpack.c.h.b16 %v133
    %v707 = vunpack.c.l.b16 %v134
    %v708 = vunpack.c.h.b16 %v134
    %v709 = vunpack.c.l.b16 %v135
    %v710 = vunpack.c.h.b16 %v135
    %v711 = vunpack.c.l.b16 %v136
    %v712 = vunpack.c.h.b16 %v136
    %v713 = vunpack.c.l.b16 %v137
    %v714 = vunpack.c.h.b16 %v137
    %v715 = vunpack.c.l.b16 %v138
    %v716 = vunpack.c.h.b16 %v138
    %v717 = vunpack.c.l.b16 %v139
    %v718 = vunpack.c.h.b16 %v139
    %v719 = vunpack.c.l.b16 %v140
    %v720 = vunpack.c.h.b16 %v140
    %v721 = vunpack.c.l.b16 %v141
    %v722 = vunpack.c.h.b16 %v141
    %v723 = vunpack.c.l.b16 %v142
    %v724 = vunpack.c.h.b16 %v142
    %v725 = vunpack.c.l.b16 %v143
    %v726 = vunpack.c.h.b16 %v143
    %v727 = vunpack.c.l.b16 %v144
    %v728 = vunpack.c.h.b16 %v144
    %v729 = vunpack.c.l.b16 %v145
    %v730 = vunpack.c.h.b16 %v145
    %v731 = vunpack.c.l.b16 %v146
    %v732 = vunpack.c.h.b16 %v146
    %v733 = vunpack.c.l.b16 %v147
    %v734 = vunpack.c.h.b16 %v147
    %v735 = vunpack.c.l.b16 %v148
    %v736 = vunpack.c.h.b16 %v148
    %v737 = vunpack.c.l.b16 %v149
    %v738 = vunpack.c.h.b16 %v149
    %v739 = vunpack.c.l.b16 %v150
    %v740 = vunpack.c.h.b16 %v150
    %v741 = vunpack.c.l.b16 %v151
    %v742 = vunpack.c.h.b16 %v151
    %v743 = vunpack.c.l.b16 %v152
    %v744 = vunpack.c.h.b16 %v152
    %v745 = vunpack.c.l.b16 %v153
    %v746 = vunpack.c.h.b16 %v153
    %v747 = vunpack.c.l.b16 %v154
    %v748 = vunpack.c.h.b16 %v154
    %v749 = vunpack.c.l.b16 %v155
    %v750 = vunpack.c.h.b16 %v155
    %v751 = vunpack.c.l.b16 %v156
    %v752 = vunpack.c.h.b16 %v156
    %v753 = vunpack.c.l.b16 %v157
    %v754 = vunpack.c.h.b16 %v157
    %v755 = vunpack.c.l.b16 %v158
    %v756 = vunpack.c.h.b16 %v158
    %v757 = vunpack.c.l.b16 %v159
    %v758 = vunpack.c.h.b16 %v159
    %v759 = vunpack.c.l.b16 %v160
    %v760 = vunpack.c.h.b16 %v160
    %v761 = vunpack.c.l.b16 %v161
    %v762 = vunpack.c.h.b16 %v161
    %v763 = vunpack.c.l.b16 %v162
    %v764 = vunpack.c.h.b16 %v162
    %v765 = vunpack.c.l.b16 %v163
    %v766 = vunpack.c.h.b16 %v163
    %v767 = vunpack.c.l.b16 %v164
    %v768 = vunpack.c.h.b16 %v164
    %v769 = vunpack.c.l.b16 %v165
    %v770 = vunpack.c.h.b16 %v165
    %v771 = vunpack.c.l.b16 %v166
    %v772 = vunpack.c.h.b16 %v166
    %v773 = vunpack.c.l.b16 %v167
    %v774 = vunpack.c.h.b16 %v167
    %v775 = vunpack.c.l.b16 %v168
    %v776 = vunpack.c.h.b16 %v168
    %v777 = vunpack.c.l.b16 %v169
    %v778 = vunpack.c.h.b16 %v169
    %v779 = vpack.c.b16 %v593, %v587
    %v780 = vpack.c.b16 %v594, %v588
    %v781 = vpack.c.b16 %v595, %v589
    %v782 = vpack.c.b16 %v596, %v590
    %v783 = vpack.c.b16 %v597, %v591
    %v784 = vpack.c.b16 %v598, %v592
    %v785 = vpack.c.b16 %v605, %v599
    %v786 = vpack.c.b16 %v606, %v600
    %v787 = vpack.c.b16 %v607, %v601
    %v788 = vpack.c.b16 %v608, %v602
    %v789 = vpack.c.b16 %v609, %v603
    %v790 = vpack.c.b16 %v610, %v604
    %v791 = vpack.c.b16 %v617, %v611
    %v792 = vpack.c.b16 %v618, %v612
    %v793 = vpack.c.b16 %v619, %v613
    %v794 = vpack.c.b16 %v620, %v614
    %v795 = vpack.c.b16 %v621, %v615
    %v796 = vpack.c.b16 %v622, %v616
    %v797 = vpack.c.b16 %v629, %v623
    %v798 = vpack.c.b16 %v630, %v624
    %v799 = vpack.c.b16 %v631, %v625
    %v800 = vpack.c.b16 %v632, %v626
    %v801 = vpack.c.b16 %v633, %v627
    %v802 = vpack.c.b16 %v634, %v628
    %v803 = vpack.c.b16 %v641, %v635
    %v804 = vpack.c.b16 %v642, %v636
    %v805 = vpack.c.b16 %v643, %v637
    %v806 = vpack.c.b16 %v644, %v638
    %v807 = vpack.c.b16 %v645, %v639
    %v808 = vpack.c.b16 %v646, %v640
    %v809 = vpack.c.b16 %v653, %v647
    %v810 = vpack.c.b16 %v654, %v648
    %v811 = vpack.c.b16 %v655, %v649
    %v812 = vpack.c.b16 %v656, %v650
    %v813 = vpack.c.b16 %v657, %v651
    %v814 = vpack.c.b16 %v658, %v652
    %v815 = vpack.c.b16 %v665, %v659
    %v816 = vpack.c.b16 %v666, %v660
    %v817 = vpack.c.b16 %v667, %v661
    %v818 = vpack.c.b16 %v668, %v662
    %v819 = vpack.c.b16 %v669, %v663
    %v820 = vpack.c.b16 %v670, %v664
    %v821 = vpack.c.b16 %v677, %v671
    %v822 = vpack.c.b16 %v678, %v672
    %v823 = vpack.c.b16 %v679, %v673
    %v824 = vpack.c.b16 %v680, %v674
    %v825 = vpack.c.b16 %v681, %v675
    %v826 = vpack.c.b16 %v682, %v676
    %v827 = vpack.c.b16 %v689, %v683
    %v828 = vpack.c.b16 %v690, %v684
    %v829 = vpack.c.b16 %v691, %v685
    %v830 = vpack.c.b16 %v692, %v686
    %v831 = vpack.c.b16 %v693, %v687
    %v832 = vpack.c.b16 %v694, %v688
    %v833 = vpack.c.b16 %v701, %v695
    %v834 = vpack.c.b16 %v702, %v696
    %v835 = vpack.c.b16 %v703, %v697
    %v836 = vpack.c.b16 %v704, %v698
    %v837 = vpack.c.b16 %v705, %v699
    %v838 = vpack.c.b16 %v706, %v700
    %v839 = vpack.c.b16 %v713, %v707
    %v840 = vpack.c.b16 %v714, %v708
    %v841 = vpack.c.b16 %v715, %v709
    %v842 = vpack.c.b16 %v716, %v710
    %v843 = vpack.c.b16 %v717, %v711
    %v844 = vpack.c.b16 %v718, %v712
    %v845 = vpack.c.b16 %v725, %v719
    %v846 = vpack.c.b16 %v726, %v720
    %v847 = vpack.c.b16 %v727, %v721
    %v848 = vpack.c.b16 %v728, %v722
    %v849 = vpack.c.b16 %v729, %v723
    %v850 = vpack.c.b16 %v730, %v724
    %v851 = vpack.c.b16 %v737, %v731
    %v852 = vpack.c.b16 %v738, %v732
    %v853 = vpack.c.b16 %v739, %v733
    %v854 = vpack.c.b16 %v740, %v734
    %v855 = vpack.c.b16 %v741, %v735
    %v856 = vpack.c.b16 %v742, %v736
    %v857 = vpack.c.b16 %v749, %v743
    %v858 = vpack.c.b16 %v750, %v744
    %v859 = vpack.c.b16 %v751, %v745
    %v860 = vpack.c.b16 %v752, %v746
    %v861 = vpack.c.b16 %v753, %v747
    %v862 = vpack.c.b16 %v754, %v748
    %v863 = vpack.c.b16 %v761, %v755
    %v864 = vpack.c.b16 %v762, %v756
    %v865 = vpack.c.b16 %v763, %v757
    %v866 = vpack.c.b16 %v764, %v758
    %v867 = vpack.c.b16 %v765, %v759
    %v868 = vpack.c.b16 %v766, %v760
    %v869 = vpack.c.b16 %v773, %v767
    %v870 = vpack.c.b16 %v774, %v768
    %v871 = vpack.c.b16 %v775, %v769
    %v872 = vpack.c.b16 %v776, %v770
    %v873 = vpack.c.b16 %v777, %v771
    %v874 = vpack.c.b16 %v778, %v772
    %971 = vmatprep.subr.bf16.mxu0 %v780
    %972 = vmatpush1.bf16.msra.mxu0 %v779
    %973 = vmatprep.subr.bf16.mxu0 %v786
    %974 = vmatpush1.bf16.msra.mxu0 %v785
    %975 = vmatprep.subr.bf16.mxu0 %v792
    %976 = vmatpush1.bf16.msra.mxu0 %v791
    %977 = vmatprep.subr.bf16.mxu0 %v798
    %978 = vmatpush1.bf16.msra.mxu0 %v797
    %979 = vmatprep.subr.bf16.mxu0 %v804
    %980 = vmatpush1.bf16.msra.mxu0 %v803
    %981 = vmatprep.subr.bf16.mxu0 %v810
    %982 = vmatpush1.bf16.msra.mxu0 %v809
    %983 = vmatprep.subr.bf16.mxu0 %v816
    %984 = vmatpush1.bf16.msra.mxu0 %v815
    %985 = vmatprep.subr.bf16.mxu0 %v822
    %986 = vmatpush1.bf16.msra.mxu0 %v821
    %987 = vmatprep.subr.bf16.mxu0 %v828
    %988 = vmatpush1.bf16.msra.mxu0 %v827
    %989 = vmatprep.subr.bf16.mxu0 %v834
    %990 = vmatpush1.bf16.msra.mxu0 %v833
    %991 = vmatprep.subr.bf16.mxu0 %v840
    %992 = vmatpush1.bf16.msra.mxu0 %v839
    %993 = vmatprep.subr.bf16.mxu0 %v846
    %994 = vmatpush1.bf16.msra.mxu0 %v845
    %995 = vmatprep.subr.bf16.mxu0 %v852
    %996 = vmatpush1.bf16.msra.mxu0 %v851
    %997 = vmatprep.subr.bf16.mxu0 %v858
    %998 = vmatpush1.bf16.msra.mxu0 %v857
    %999 = vmatprep.subr.bf16.mxu0 %v864
    %1000 = vmatpush1.bf16.msra.mxu0 %v863
    %1001 = vmatprep.subr.bf16.mxu0 %v870
    %1002 = vmatpush1.bf16.msra.mxu0 %v869
    %1003 = vmatprep.mubr.bf16.mxu0 0
    %1004 = vmatmul.mubr.bf16.gmra.mrb[0].mxu0 0
    %v1005 = vpop.f32.mrb[0].mxu0
    %v1006 = vadd.f32 0.0, %v1005
    %v1007 = vpop.f32.mrb[0].mxu0
    %v1008 = vadd.f32 0.0, %v1007
    %v1009 = vpop.f32.mrb[0].mxu0
    %v1010 = vpop.f32.mrb[0].mxu0
    %1011 = vdwg.mxu0
    %1012 = vmatprep.subr.bf16.mxu0 %v782
    %1013 = vmatpush1.bf16.msra.mxu0 %v781
    %1014 = vmatprep.subr.bf16.mxu0 %v788
    %1015 = vmatpush1.bf16.msra.mxu0 %v787
    %1016 = vmatprep.subr.bf16.mxu0 %v794
    %1017 = vmatpush1.bf16.msra.mxu0 %v793
    %1018 = vmatprep.subr.bf16.mxu0 %v800
    %1019 = vmatpush1.bf16.msra.mxu0 %v799
    %1020 = vmatprep.subr.bf16.mxu0 %v806
    %1021 = vmatpush1.bf16.msra.mxu0 %v805
    %1022 = vmatprep.subr.bf16.mxu0 %v812
    %1023 = vmatpush1.bf16.msra.mxu0 %v811
    %1024 = vmatprep.subr.bf16.mxu0 %v818
    %1025 = vmatpush1.bf16.msra.mxu0 %v817
    %1026 = vmatprep.subr.bf16.mxu0 %v824
    %1027 = vmatpush1.bf16.msra.mxu0 %v823
    %1028 = vmatprep.subr.bf16.mxu0 %v830
    %1029 = vmatpush1.bf16.msra.mxu0 %v829
    %1030 = vmatprep.subr.bf16.mxu0 %v836
    %1031 = vmatpush1.bf16.msra.mxu0 %v835
    %1032 = vmatprep.subr.bf16.mxu0 %v842
    %1033 = vmatpush1.bf16.msra.mxu0 %v841
    %1034 = vmatprep.subr.bf16.mxu0 %v848
    %1035 = vmatpush1.bf16.msra.mxu0 %v847
    %1036 = vmatprep.subr.bf16.mxu0 %v854
    %1037 = vmatpush1.bf16.msra.mxu0 %v853
    %1038 = vmatprep.subr.bf16.mxu0 %v860
    %1039 = vmatpush1.bf16.msra.mxu0 %v859
    %1040 = vmatprep.subr.bf16.mxu0 %v866
    %1041 = vmatpush1.bf16.msra.mxu0 %v865
    %1042 = vmatprep.subr.bf16.mxu0 %v872
    %1043 = vmatpush1.bf16.msra.mxu0 %v871
    %1044 = vmatprep.mubr.bf16.mxu0 0
    %1045 = vmatmul.mubr.bf16.gmra.mrb[0].mxu0 0
    %v1046 = vpop.f32.mrb[0].mxu0
    %v1047 = vadd.f32 0.0, %v1046
    %v1048 = vpop.f32.mrb[0].mxu0
    %v1049 = vadd.f32 0.0, %v1048
    %v1050 = vpop.f32.mrb[0].mxu0
    %v1051 = vpop.f32.mrb[0].mxu0
    %1052 = vdwg.mxu0
    %1053 = vmatprep.subr.bf16.mxu0 %v784
    %1054 = vmatpush1.bf16.msra.mxu0 %v783
    %1055 = vmatprep.subr.bf16.mxu0 %v790
    %1056 = vmatpush1.bf16.msra.mxu0 %v789
    %1057 = vmatprep.subr.bf16.mxu0 %v796
    %1058 = vmatpush1.bf16.msra.mxu0 %v795
    %1059 = vmatprep.subr.bf16.mxu0 %v802
    %1060 = vmatpush1.bf16.msra.mxu0 %v801
    %1061 = vmatprep.subr.bf16.mxu0 %v808
    %1062 = vmatpush1.bf16.msra.mxu0 %v807
    %1063 = vmatprep.subr.bf16.mxu0 %v814
    %1064 = vmatpush1.bf16.msra.mxu0 %v813
    %1065 = vmatprep.subr.bf16.mxu0 %v820
    %1066 = vmatpush1.bf16.msra.mxu0 %v819
    %1067 = vmatprep.subr.bf16.mxu0 %v826
    %1068 = vmatpush1.bf16.msra.mxu0 %v825
    %1069 = vmatprep.subr.bf16.mxu0 %v832
    %1070 = vmatpush1.bf16.msra.mxu0 %v831
    %1071 = vmatprep.subr.bf16.mxu0 %v838
    %1072 = vmatpush1.bf16.msra.mxu0 %v837
    %1073 = vmatprep.subr.bf16.mxu0 %v844
    %1074 = vmatpush1.bf16.msra.mxu0 %v843
    %1075 = vmatprep.subr.bf16.mxu0 %v850
    %1076 = vmatpush1.bf16.msra.mxu0 %v849
    %1077 = vmatprep.subr.bf16.mxu0 %v856
    %1078 = vmatpush1.bf16.msra.mxu0 %v855
    %1079 = vmatprep.subr.bf16.mxu0 %v862
    %1080 = vmatpush1.bf16.msra.mxu0 %v861
    %1081 = vmatprep.subr.bf16.mxu0 %v868
    %1082 = vmatpush1.bf16.msra.mxu0 %v867
    %1083 = vmatprep.subr.bf16.mxu0 %v874
    %1084 = vmatpush1.bf16.msra.mxu0 %v873
    %1085 = vmatprep.mubr.bf16.mxu0 0
    %1086 = vmatmul.mubr.bf16.gmra.mrb[0].mxu0 0
    %v1087 = vpop.f32.mrb[0].mxu0
    %v1088 = vadd.f32 0.0, %v1087
    %v1089 = vpop.f32.mrb[0].mxu0
    %v1090 = vadd.f32 0.0, %v1089
    %v1091 = vpop.f32.mrb[0].mxu0
    %v1092 = vpop.f32.mrb[0].mxu0
    %1093 = vdwg.mxu0
    %v1094 = vadd.f32 %v272, %v1006
    %v1095 = vadd.f32 %v274, %v1008
    %v1096 = vxor.u32 %v1094, 2147483648
    %v1097 = vxor.u32 %v1095, 2147483648
    %v1098 = vmul.f32 %v1096, 1.442695
    %v1099 = vpow.pop %v1098
    %v1100 = vmul.f32 %v1097, 1.442695
    %v1101 = vpow.pop %v1100
    %v1102 = vadd.f32 %v1099, 1.0
    %v1103 = vadd.f32 %v1101, 1.0
    %v1104 = vrcp.pop %v1102
    %v1105 = vmul.f32 1.0, %v1104
    %v1106 = vrcp.pop %v1103
    %v1107 = vmul.f32 1.0, %v1106
    %v1108 = vadd.f32 %v313, %v1047
    %v1109 = vadd.f32 %v315, %v1049
    %v1110 = vxor.u32 %v1108, 2147483648
    %v1111 = vxor.u32 %v1109, 2147483648
    %v1112 = vmul.f32 %v1110, 1.442695
    %v1113 = vpow.pop %v1112
    %v1114 = vmul.f32 %v1111, 1.442695
    %v1115 = vpow.pop %v1114
    %v1116 = vadd.f32 %v1113, 1.0
    %v1117 = vadd.f32 %v1115, 1.0
    %v1118 = vrcp.pop %v1116
    %v1119 = vmul.f32 1.0, %v1118
    %v1120 = vrcp.pop %v1117
    %v1121 = vmul.f32 1.0, %v1120
    %v1123 = vlaneseq
    %v1124 = vshrl.u32 %v1123, 7
    %v1125 = vsub.s32 0, %v1124
    %v1126 = vrot.slane %v170, %v1125
    %v1127 = vlaneseq
    %v1128 = vshrl.u32 %v1127, 7
    %v1129 = vsub.s32 1, %v1128
    %v1130 = vrot.slane %v170, %v1129
    %v1133 = vadd.f32 %v1088, %v1126
    %v1134 = vadd.f32 %v1090, %v1130
    %v1135 = vmul.f32 %v1105, %v1133
    %v1136 = vmul.f32 %v1107, %v1134
    %v1137 = vadd.f32 %v354, %v1135
    %v1138 = vadd.f32 %v356, %v1136
    %v1139 = vtanh.pop %v1137
    %v1140 = vtanh.pop %v1138
    %v1141 = vsub.f32 0.0, %v1139
    %v1142 = vsub.f32 0.0, %v1140
    %v1143 = vmul.f32 %v1119, %v1141
    %v1144 = vmul.f32 %v1121, %v1142
    %v1145 = vadd.f32 %v1139, %v1143
    %v1146 = vadd.f32 %v1140, %v1144
    %v1147 = vpack.c.bf16 %v1145, %v1145
    %v1148 = vpack.c.bf16 %v1146, %v1146
    %1149 = vmatprep.subr.bf16.mxu0 %v780
    %1150 = vmatpush1.bf16.msra.mxu0 %v779
    %1151 = vmatprep.subr.bf16.mxu0 %v786
    %1152 = vmatpush1.bf16.msra.mxu0 %v785
    %1153 = vmatprep.subr.bf16.mxu0 %v792
    %1154 = vmatpush1.bf16.msra.mxu0 %v791
    %1155 = vmatprep.subr.bf16.mxu0 %v798
    %1156 = vmatpush1.bf16.msra.mxu0 %v797
    %1157 = vmatprep.subr.bf16.mxu0 %v804
    %1158 = vmatpush1.bf16.msra.mxu0 %v803
    %1159 = vmatprep.subr.bf16.mxu0 %v810
    %1160 = vmatpush1.bf16.msra.mxu0 %v809
    %1161 = vmatprep.subr.bf16.mxu0 %v816
    %1162 = vmatpush1.bf16.msra.mxu0 %v815
    %1163 = vmatprep.subr.bf16.mxu0 %v822
    %1164 = vmatpush1.bf16.msra.mxu0 %v821
    %1165 = vmatprep.subr.bf16.mxu0 %v828
    %1166 = vmatpush1.bf16.msra.mxu0 %v827
    %1167 = vmatprep.subr.bf16.mxu0 %v834
    %1168 = vmatpush1.bf16.msra.mxu0 %v833
    %1169 = vmatprep.subr.bf16.mxu0 %v840
    %1170 = vmatpush1.bf16.msra.mxu0 %v839
    %1171 = vmatprep.subr.bf16.mxu0 %v846
    %1172 = vmatpush1.bf16.msra.mxu0 %v845
    %1173 = vmatprep.subr.bf16.mxu0 %v852
    %1174 = vmatpush1.bf16.msra.mxu0 %v851
    %1175 = vmatprep.subr.bf16.mxu0 %v858
    %1176 = vmatpush1.bf16.msra.mxu0 %v857
    %1177 = vmatprep.subr.bf16.mxu0 %v864
    %1178 = vmatpush1.bf16.msra.mxu0 %v863
    %1179 = vmatprep.subr.bf16.mxu0 %v870
    %1180 = vmatpush1.bf16.msra.mxu0 %v869
    %1181 = vmatprep.mubr.bf16.mxu0 %v1148
    %1182 = vmatmul.mubr.bf16.gmra.mrb[0].mxu0 %v1147
    %v1183 = vpop.f32.mrb[0].mxu0
    %v1184 = vadd.f32 0.0, %v1183
    %v1185 = vpop.f32.mrb[0].mxu0
    %v1186 = vadd.f32 0.0, %v1185
    %v1187 = vpop.f32.mrb[0].mxu0
    %v1188 = vpop.f32.mrb[0].mxu0
    %1189 = vdwg.mxu0
    %1190 = vmatprep.subr.bf16.mxu0 %v782
    %1191 = vmatpush1.bf16.msra.mxu0 %v781
    %1192 = vmatprep.subr.bf16.mxu0 %v788
    %1193 = vmatpush1.bf16.msra.mxu0 %v787
    %1194 = vmatprep.subr.bf16.mxu0 %v794
    %1195 = vmatpush1.bf16.msra.mxu0 %v793
    %1196 = vmatprep.subr.bf16.mxu0 %v800
    %1197 = vmatpush1.bf16.msra.mxu0 %v799
    %1198 = vmatprep.subr.bf16.mxu0 %v806
    %1199 = vmatpush1.bf16.msra.mxu0 %v805
    %1200 = vmatprep.subr.bf16.mxu0 %v812
    %1201 = vmatpush1.bf16.msra.mxu0 %v811
    %1202 = vmatprep.subr.bf16.mxu0 %v818
    %1203 = vmatpush1.bf16.msra.mxu0 %v817
    %1204 = vmatprep.subr.bf16.mxu0 %v824
    %1205 = vmatpush1.bf16.msra.mxu0 %v823
    %1206 = vmatprep.subr.bf16.mxu0 %v830
    %1207 = vmatpush1.bf16.msra.mxu0 %v829
    %1208 = vmatprep.subr.bf16.mxu0 %v836
    %1209 = vmatpush1.bf16.msra.mxu0 %v835
    %1210 = vmatprep.subr.bf16.mxu0 %v842
    %1211 = vmatpush1.bf16.msra.mxu0 %v841
    %1212 = vmatprep.subr.bf16.mxu0 %v848
    %1213 = vmatpush1.bf16.msra.mxu0 %v847
    %1214 = vmatprep.subr.bf16.mxu0 %v854
    %1215 = vmatpush1.bf16.msra.mxu0 %v853
    %1216 = vmatprep.subr.bf16.mxu0 %v860
    %1217 = vmatpush1.bf16.msra.mxu0 %v859
    %1218 = vmatprep.subr.bf16.mxu0 %v866
    %1219 = vmatpush1.bf16.msra.mxu0 %v865
    %1220 = vmatprep.subr.bf16.mxu0 %v872
    %1221 = vmatpush1.bf16.msra.mxu0 %v871
    %1222 = vmatprep.mubr.bf16.mxu0 %v1148
    %1223 = vmatmul.mubr.bf16.gmra.mrb[0].mxu0 %v1147
    %v1224 = vpop.f32.mrb[0].mxu0
    %v1225 = vadd.f32 0.0, %v1224
    %v1226 = vpop.f32.mrb[0].mxu0
    %v1227 = vadd.f32 0.0, %v1226
    %v1228 = vpop.f32.mrb[0].mxu0
    %v1229 = vpop.f32.mrb[0].mxu0
    %1230 = vdwg.mxu0
    %1231 = vmatprep.subr.bf16.mxu0 %v784
    %1232 = vmatpush1.bf16.msra.mxu0 %v783
    %1233 = vmatprep.subr.bf16.mxu0 %v790
    %1234 = vmatpush1.bf16.msra.mxu0 %v789
    %1235 = vmatprep.subr.bf16.mxu0 %v796
    %1236 = vmatpush1.bf16.msra.mxu0 %v795
    %1237 = vmatprep.subr.bf16.mxu0 %v802
    %1238 = vmatpush1.bf16.msra.mxu0 %v801
    %1239 = vmatprep.subr.bf16.mxu0 %v808
    %1240 = vmatpush1.bf16.msra.mxu0 %v807
    %1241 = vmatprep.subr.bf16.mxu0 %v814
    %1242 = vmatpush1.bf16.msra.mxu0 %v813
    %1243 = vmatprep.subr.bf16.mxu0 %v820
    %1244 = vmatpush1.bf16.msra.mxu0 %v819
    %1245 = vmatprep.subr.bf16.mxu0 %v826
    %1246 = vmatpush1.bf16.msra.mxu0 %v825
    %1247 = vmatprep.subr.bf16.mxu0 %v832
    %1248 = vmatpush1.bf16.msra.mxu0 %v831
    %1249 = vmatprep.subr.bf16.mxu0 %v838
    %1250 = vmatpush1.bf16.msra.mxu0 %v837
    %1251 = vmatprep.subr.bf16.mxu0 %v844
    %1252 = vmatpush1.bf16.msra.mxu0 %v843
    %1253 = vmatprep.subr.bf16.mxu0 %v850
    %1254 = vmatpush1.bf16.msra.mxu0 %v849
    %1255 = vmatprep.subr.bf16.mxu0 %v856
    %1256 = vmatpush1.bf16.msra.mxu0 %v855
    %1257 = vmatprep.subr.bf16.mxu0 %v862
    %1258 = vmatpush1.bf16.msra.mxu0 %v861
    %1259 = vmatprep.subr.bf16.mxu0 %v868
    %1260 = vmatpush1.bf16.msra.mxu0 %v867
    %1261 = vmatprep.subr.bf16.mxu0 %v874
    %1262 = vmatpush1.bf16.msra.mxu0 %v873
    %1263 = vmatprep.mubr.bf16.mxu0 %v1148
    %1264 = vmatmul.mubr.bf16.gmra.mrb[0].mxu0 %v1147
    %v1265 = vpop.f32.mrb[0].mxu0
    %v1266 = vadd.f32 0.0, %v1265
    %v1267 = vpop.f32.mrb[0].mxu0
    %v1268 = vadd.f32 0.0, %v1267
    %v1269 = vpop.f32.mrb[0].mxu0
    %v1270 = vpop.f32.mrb[0].mxu0
    %1271 = vdwg.mxu0
    %v1272 = vadd.f32 %v403, %v1184
    %v1273 = vadd.f32 %v405, %v1186
    %v1274 = vxor.u32 %v1272, 2147483648
    %v1275 = vxor.u32 %v1273, 2147483648
    %v1276 = vmul.f32 %v1274, 1.442695
    %v1277 = vpow.pop %v1276
    %v1278 = vmul.f32 %v1275, 1.442695
    %v1279 = vpow.pop %v1278
    %v1280 = vadd.f32 %v1277, 1.0
    %v1281 = vadd.f32 %v1279, 1.0
    %v1282 = vrcp.pop %v1280
    %v1283 = vmul.f32 1.0, %v1282
    %v1284 = vrcp.pop %v1281
    %v1285 = vmul.f32 1.0, %v1284
    %v1286 = vadd.f32 %v444, %v1225
    %v1287 = vadd.f32 %v446, %v1227
    %v1288 = vxor.u32 %v1286, 2147483648
    %v1289 = vxor.u32 %v1287, 2147483648
    %v1290 = vmul.f32 %v1288, 1.442695
    %v1291 = vpow.pop %v1290
    %v1292 = vmul.f32 %v1289, 1.442695
    %v1293 = vpow.pop %v1292
    %v1294 = vadd.f32 %v1291, 1.0
    %v1295 = vadd.f32 %v1293, 1.0
    %v1296 = vrcp.pop %v1294
    %v1297 = vmul.f32 1.0, %v1296
    %v1298 = vrcp.pop %v1295
    %v1299 = vmul.f32 1.0, %v1298
    %v1300 = vadd.f32 %v1266, %v1126
    %v1301 = vadd.f32 %v1268, %v1130
    %v1302 = vmul.f32 %v1283, %v1300
    %v1303 = vmul.f32 %v1285, %v1301
    %v1304 = vadd.f32 %v485, %v1302
    %v1305 = vadd.f32 %v487, %v1303
    %v1306 = vtanh.pop %v1304
    %v1307 = vtanh.pop %v1305
    %v1308 = vsub.f32 %v1145, %v1306
    %v1309 = vsub.f32 %v1146, %v1307
    %v1310 = vmul.f32 %v1297, %v1308
    %v1311 = vmul.f32 %v1299, %v1309
    %v1312 = vadd.f32 %v1306, %v1310
    %v1313 = vadd.f32 %v1307, %v1311
    %v1314 = vld [vmem:[%s1] sm:$0xf]
    %v1315 = vld [vmem:[#allocation4] sm:$0xff]
    %v1316 = vld [vmem:[#allocation4 + $0x8] sm:$0xff]
    %v1317 = vld [vmem:[#allocation4 + $0x10] sm:$0xff]
    %v1318 = vld [vmem:[#allocation4 + $0x18] sm:$0xff]
    %v1319 = vld [vmem:[#allocation4 + $0x20] sm:$0xff]
    %v1320 = vld [vmem:[#allocation4 + $0x28] sm:$0xff]
    %v1321 = vld [vmem:[#allocation4 + $0x30] sm:$0xff]
    %v1322 = vld [vmem:[#allocation4 + $0x38] sm:$0xff]
    %v1323 = vld [vmem:[#allocation4 + $0x40] sm:$0xff]
    %v1324 = vld [vmem:[#allocation4 + $0x48] sm:$0xff]
    %v1325 = vld [vmem:[#allocation4 + $0x50] sm:$0xff]
    %v1326 = vld [vmem:[#allocation4 + $0x58] sm:$0xff]
    %v1327 = vld [vmem:[#allocation4 + $0x60] sm:$0xff]
    %v1328 = vld [vmem:[#allocation4 + $0x68] sm:$0xff]
    %v1329 = vld [vmem:[#allocation4 + $0x70] sm:$0xff]
    %v1330 = vld [vmem:[#allocation4 + $0x78] sm:$0xff]
    %v1331 = vld [vmem:[#allocation4 + $0x80] sm:$0xff]
    %v1332 = vld [vmem:[#allocation4 + $0x88] sm:$0xff]
    %v1333 = vld [vmem:[#allocation4 + $0x90] sm:$0xff]
    %v1334 = vld [vmem:[#allocation4 + $0x98] sm:$0xff]
    %v1335 = vld [vmem:[#allocation4 + $0xa0] sm:$0xff]
    %v1336 = vld [vmem:[#allocation4 + $0xa8] sm:$0xff]
    %v1337 = vld [vmem:[#allocation4 + $0xb0] sm:$0xff]
    %v1338 = vld [vmem:[#allocation4 + $0xb8] sm:$0xff]
    %v1339 = vld [vmem:[#allocation4 + $0xc0] sm:$0xff]
    %v1340 = vld [vmem:[#allocation4 + $0xc8] sm:$0xff]
    %v1341 = vld [vmem:[#allocation4 + $0xd0] sm:$0xff]
    %v1342 = vld [vmem:[#allocation4 + $0xd8] sm:$0xff]
    %v1343 = vld [vmem:[#allocation4 + $0xe0] sm:$0xff]
    %v1344 = vld [vmem:[#allocation4 + $0xe8] sm:$0xff]
    %v1345 = vld [vmem:[#allocation4 + $0xf0] sm:$0xff]
    %v1346 = vld [vmem:[#allocation4 + $0xf8] sm:$0xff]
    %v1347 = vld [vmem:[#allocation4 + $0x100] sm:$0xff]
    %v1348 = vld [vmem:[#allocation4 + $0x108] sm:$0xff]
    %v1349 = vld [vmem:[#allocation4 + $0x110] sm:$0xff]
    %v1350 = vld [vmem:[#allocation4 + $0x118] sm:$0xff]
    %v1351 = vld [vmem:[#allocation4 + $0x120] sm:$0xff]
    %v1352 = vld [vmem:[#allocation4 + $0x128] sm:$0xff]
    %v1353 = vld [vmem:[#allocation4 + $0x130] sm:$0xff]
    %v1354 = vld [vmem:[#allocation4 + $0x138] sm:$0xff]
    %v1355 = vld [vmem:[#allocation4 + $0x140] sm:$0xff]
    %v1356 = vld [vmem:[#allocation4 + $0x148] sm:$0xff]
    %v1357 = vld [vmem:[#allocation4 + $0x150] sm:$0xff]
    %v1358 = vld [vmem:[#allocation4 + $0x158] sm:$0xff]
    %v1359 = vld [vmem:[#allocation4 + $0x160] sm:$0xff]
    %v1360 = vld [vmem:[#allocation4 + $0x168] sm:$0xff]
    %v1361 = vld [vmem:[#allocation4 + $0x170] sm:$0xff]
    %v1362 = vld [vmem:[#allocation4 + $0x178] sm:$0xff]
    %v1363 = vld [vmem:[%s7] sm:$0x3f]
    %v1365 = vlaneseq
    %v1366 = vshrl.u32 %v1365, 7
    %v1367 = vsub.s32 0, %v1366
    %v1368 = vrot.slane %v1363, %v1367
    %v1369 = vlaneseq
    %v1370 = vshrl.u32 %v1369, 7
    %v1371 = vsub.s32 1, %v1370
    %v1372 = vrot.slane %v1363, %v1371
    %v1373 = vlaneseq
    %v1374 = vshrl.u32 %v1373, 7
    %v1375 = vsub.s32 2, %v1374
    %v1376 = vrot.slane %v1363, %v1375
    %v1377 = vlaneseq
    %v1378 = vshrl.u32 %v1377, 7
    %v1379 = vsub.s32 3, %v1378
    %v1380 = vrot.slane %v1363, %v1379
    %v1381 = vlaneseq
    %v1382 = vshrl.u32 %v1381, 7
    %v1383 = vsub.s32 4, %v1382
    %v1384 = vrot.slane %v1363, %v1383
    %v1385 = vlaneseq
    %v1386 = vshrl.u32 %v1385, 7
    %v1387 = vsub.s32 5, %v1386
    %v1388 = vrot.slane %v1363, %v1387
    %v1443 = vunpack.c.l.b16 %v1315
    %v1444 = vunpack.c.h.b16 %v1315
    %v1445 = vunpack.c.l.b16 %v1316
    %v1446 = vunpack.c.h.b16 %v1316
    %v1447 = vunpack.c.l.b16 %v1317
    %v1448 = vunpack.c.h.b16 %v1317
    %v1449 = vunpack.c.l.b16 %v1318
    %v1450 = vunpack.c.h.b16 %v1318
    %v1451 = vunpack.c.l.b16 %v1319
    %v1452 = vunpack.c.h.b16 %v1319
    %v1453 = vunpack.c.l.b16 %v1320
    %v1454 = vunpack.c.h.b16 %v1320
    %v1455 = vunpack.c.l.b16 %v1321
    %v1456 = vunpack.c.h.b16 %v1321
    %v1457 = vunpack.c.l.b16 %v1322
    %v1458 = vunpack.c.h.b16 %v1322
    %v1459 = vunpack.c.l.b16 %v1323
    %v1460 = vunpack.c.h.b16 %v1323
    %v1461 = vunpack.c.l.b16 %v1324
    %v1462 = vunpack.c.h.b16 %v1324
    %v1463 = vunpack.c.l.b16 %v1325
    %v1464 = vunpack.c.h.b16 %v1325
    %v1465 = vunpack.c.l.b16 %v1326
    %v1466 = vunpack.c.h.b16 %v1326
    %v1467 = vunpack.c.l.b16 %v1327
    %v1468 = vunpack.c.h.b16 %v1327
    %v1469 = vunpack.c.l.b16 %v1328
    %v1470 = vunpack.c.h.b16 %v1328
    %v1471 = vunpack.c.l.b16 %v1329
    %v1472 = vunpack.c.h.b16 %v1329
    %v1473 = vunpack.c.l.b16 %v1330
    %v1474 = vunpack.c.h.b16 %v1330
    %v1475 = vunpack.c.l.b16 %v1331
    %v1476 = vunpack.c.h.b16 %v1331
    %v1477 = vunpack.c.l.b16 %v1332
    %v1478 = vunpack.c.h.b16 %v1332
    %v1479 = vunpack.c.l.b16 %v1333
    %v1480 = vunpack.c.h.b16 %v1333
    %v1481 = vunpack.c.l.b16 %v1334
    %v1482 = vunpack.c.h.b16 %v1334
    %v1483 = vunpack.c.l.b16 %v1335
    %v1484 = vunpack.c.h.b16 %v1335
    %v1485 = vunpack.c.l.b16 %v1336
    %v1486 = vunpack.c.h.b16 %v1336
    %v1487 = vunpack.c.l.b16 %v1337
    %v1488 = vunpack.c.h.b16 %v1337
    %v1489 = vunpack.c.l.b16 %v1338
    %v1490 = vunpack.c.h.b16 %v1338
    %v1491 = vunpack.c.l.b16 %v1339
    %v1492 = vunpack.c.h.b16 %v1339
    %v1493 = vunpack.c.l.b16 %v1340
    %v1494 = vunpack.c.h.b16 %v1340
    %v1495 = vunpack.c.l.b16 %v1341
    %v1496 = vunpack.c.h.b16 %v1341
    %v1497 = vunpack.c.l.b16 %v1342
    %v1498 = vunpack.c.h.b16 %v1342
    %v1499 = vunpack.c.l.b16 %v1343
    %v1500 = vunpack.c.h.b16 %v1343
    %v1501 = vunpack.c.l.b16 %v1344
    %v1502 = vunpack.c.h.b16 %v1344
    %v1503 = vunpack.c.l.b16 %v1345
    %v1504 = vunpack.c.h.b16 %v1345
    %v1505 = vunpack.c.l.b16 %v1346
    %v1506 = vunpack.c.h.b16 %v1346
    %v1507 = vunpack.c.l.b16 %v1347
    %v1508 = vunpack.c.h.b16 %v1347
    %v1509 = vunpack.c.l.b16 %v1348
    %v1510 = vunpack.c.h.b16 %v1348
    %v1511 = vunpack.c.l.b16 %v1349
    %v1512 = vunpack.c.h.b16 %v1349
    %v1513 = vunpack.c.l.b16 %v1350
    %v1514 = vunpack.c.h.b16 %v1350
    %v1515 = vunpack.c.l.b16 %v1351
    %v1516 = vunpack.c.h.b16 %v1351
    %v1517 = vunpack.c.l.b16 %v1352
    %v1518 = vunpack.c.h.b16 %v1352
    %v1519 = vunpack.c.l.b16 %v1353
    %v1520 = vunpack.c.h.b16 %v1353
    %v1521 = vunpack.c.l.b16 %v1354
    %v1522 = vunpack.c.h.b16 %v1354
    %v1523 = vunpack.c.l.b16 %v1355
    %v1524 = vunpack.c.h.b16 %v1355
    %v1525 = vunpack.c.l.b16 %v1356
    %v1526 = vunpack.c.h.b16 %v1356
    %v1527 = vunpack.c.l.b16 %v1357
    %v1528 = vunpack.c.h.b16 %v1357
    %v1529 = vunpack.c.l.b16 %v1358
    %v1530 = vunpack.c.h.b16 %v1358
    %v1531 = vunpack.c.l.b16 %v1359
    %v1532 = vunpack.c.h.b16 %v1359
    %v1533 = vunpack.c.l.b16 %v1360
    %v1534 = vunpack.c.h.b16 %v1360
    %v1535 = vunpack.c.l.b16 %v1361
    %v1536 = vunpack.c.h.b16 %v1361
    %v1537 = vunpack.c.l.b16 %v1362
    %v1538 = vunpack.c.h.b16 %v1362
    %v1539 = vpack.c.b16 %v1449, %v1443
    %v1540 = vpack.c.b16 %v1450, %v1444
    %v1541 = vpack.c.b16 %v1451, %v1445
    %v1542 = vpack.c.b16 %v1452, %v1446
    %v1543 = vpack.c.b16 %v1453, %v1447
    %v1544 = vpack.c.b16 %v1454, %v1448
    %v1545 = vpack.c.b16 %v1461, %v1455
    %v1546 = vpack.c.b16 %v1462, %v1456
    %v1547 = vpack.c.b16 %v1463, %v1457
    %v1548 = vpack.c.b16 %v1464, %v1458
    %v1549 = vpack.c.b16 %v1465, %v1459
    %v1550 = vpack.c.b16 %v1466, %v1460
    %v1551 = vpack.c.b16 %v1473, %v1467
    %v1552 = vpack.c.b16 %v1474, %v1468
    %v1553 = vpack.c.b16 %v1475, %v1469
    %v1554 = vpack.c.b16 %v1476, %v1470
    %v1555 = vpack.c.b16 %v1477, %v1471
    %v1556 = vpack.c.b16 %v1478, %v1472
    %v1557 = vpack.c.b16 %v1485, %v1479
    %v1558 = vpack.c.b16 %v1486, %v1480
    %v1559 = vpack.c.b16 %v1487, %v1481
    %v1560 = vpack.c.b16 %v1488, %v1482
    %v1561 = vpack.c.b16 %v1489, %v1483
    %v1562 = vpack.c.b16 %v1490, %v1484
    %v1563 = vpack.c.b16 %v1497, %v1491
    %v1564 = vpack.c.b16 %v1498, %v1492
    %v1565 = vpack.c.b16 %v1499, %v1493
    %v1566 = vpack.c.b16 %v1500, %v1494
    %v1567 = vpack.c.b16 %v1501, %v1495
    %v1568 = vpack.c.b16 %v1502, %v1496
    %v1569 = vpack.c.b16 %v1509, %v1503
    %v1570 = vpack.c.b16 %v1510, %v1504
    %v1571 = vpack.c.b16 %v1511, %v1505
    %v1572 = vpack.c.b16 %v1512, %v1506
    %v1573 = vpack.c.b16 %v1513, %v1507
    %v1574 = vpack.c.b16 %v1514, %v1508
    %v1575 = vpack.c.b16 %v1521, %v1515
    %v1576 = vpack.c.b16 %v1522, %v1516
    %v1577 = vpack.c.b16 %v1523, %v1517
    %v1578 = vpack.c.b16 %v1524, %v1518
    %v1579 = vpack.c.b16 %v1525, %v1519
    %v1580 = vpack.c.b16 %v1526, %v1520
    %v1581 = vpack.c.b16 %v1533, %v1527
    %v1582 = vpack.c.b16 %v1534, %v1528
    %v1583 = vpack.c.b16 %v1535, %v1529
    %v1584 = vpack.c.b16 %v1536, %v1530
    %v1585 = vpack.c.b16 %v1537, %v1531
    %v1586 = vpack.c.b16 %v1538, %v1532
    %1635 = vmatprep.subr.bf16.mxu0 %v1540
    %1636 = vmatpush1.bf16.msra.mxu0 %v1539
    %1637 = vmatprep.subr.bf16.mxu0 %v1546
    %1638 = vmatpush1.bf16.msra.mxu0 %v1545
    %1639 = vmatprep.subr.bf16.mxu0 %v1552
    %1640 = vmatpush1.bf16.msra.mxu0 %v1551
    %1641 = vmatprep.subr.bf16.mxu0 %v1558
    %1642 = vmatpush1.bf16.msra.mxu0 %v1557
    %1643 = vmatprep.subr.bf16.mxu0 %v1564
    %1644 = vmatpush1.bf16.msra.mxu0 %v1563
    %1645 = vmatprep.subr.bf16.mxu0 %v1570
    %1646 = vmatpush1.bf16.msra.mxu0 %v1569
    %1647 = vmatprep.subr.bf16.mxu0 %v1576
    %1648 = vmatpush1.bf16.msra.mxu0 %v1575
    %1649 = vmatprep.subr.bf16.mxu0 %v1582
    %1650 = vmatpush1.bf16.msra.mxu0 %v1581
    %1651 = vmatprep.subr.bf16.mxu0 0
    %1652 = vmatpush1.bf16.msra.mxu0 0
    %1653 = vmatprep.subr.bf16.mxu0 0
    %1654 = vmatpush1.bf16.msra.mxu0 0
    %1655 = vmatprep.subr.bf16.mxu0 0
    %1656 = vmatpush1.bf16.msra.mxu0 0
    %1657 = vmatprep.subr.bf16.mxu0 0
    %1658 = vmatpush1.bf16.msra.mxu0 0
    %1659 = vmatprep.subr.bf16.mxu0 0
    %1660 = vmatpush1.bf16.msra.mxu0 0
    %1661 = vmatprep.subr.bf16.mxu0 0
    %1662 = vmatpush1.bf16.msra.mxu0 0
    %1663 = vmatprep.subr.bf16.mxu0 0
    %1664 = vmatpush1.bf16.msra.mxu0 0
    %1665 = vmatprep.subr.bf16.mxu0 0
    %1666 = vmatpush1.bf16.msra.mxu0 0
    %1667 = vmatprep.mubr.bf16.mxu0 0
    %1668 = vmatmul.mubr.bf16.gmra.mrb[0].mxu0 %v1314
    %v1669 = vpop.f32.mrb[0].mxu0
    %v1670 = vadd.f32 %v1368, %v1669
    %v1671 = vpop.f32.mrb[0].mxu0
    %v1672 = vadd.f32 %v1372, %v1671
    %v1673 = vpop.f32.mrb[0].mxu0
    %v1674 = vpop.f32.mrb[0].mxu0
    %1675 = vdwg.mxu0
    %1676 = vmatprep.subr.bf16.mxu0 %v1542
    %1677 = vmatpush1.bf16.msra.mxu0 %v1541
    %1678 = vmatprep.subr.bf16.mxu0 %v1548
    %1679 = vmatpush1.bf16.msra.mxu0 %v1547
    %1680 = vmatprep.subr.bf16.mxu0 %v1554
    %1681 = vmatpush1.bf16.msra.mxu0 %v1553
    %1682 = vmatprep.subr.bf16.mxu0 %v1560
    %1683 = vmatpush1.bf16.msra.mxu0 %v1559
    %1684 = vmatprep.subr.bf16.mxu0 %v1566
    %1685 = vmatpush1.bf16.msra.mxu0 %v1565
    %1686 = vmatprep.subr.bf16.mxu0 %v1572
    %1687 = vmatpush1.bf16.msra.mxu0 %v1571
    %1688 = vmatprep.subr.bf16.mxu0 %v1578
    %1689 = vmatpush1.bf16.msra.mxu0 %v1577
    %1690 = vmatprep.subr.bf16.mxu0 %v1584
    %1691 = vmatpush1.bf16.msra.mxu0 %v1583
    %1692 = vmatprep.subr.bf16.mxu0 0
    %1693 = vmatpush1.bf16.msra.mxu0 0
    %1694 = vmatprep.subr.bf16.mxu0 0
    %1695 = vmatpush1.bf16.msra.mxu0 0
    %1696 = vmatprep.subr.bf16.mxu0 0
    %1697 = vmatpush1.bf16.msra.mxu0 0
    %1698 = vmatprep.subr.bf16.mxu0 0
    %1699 = vmatpush1.bf16.msra.mxu0 0
    %1700 = vmatprep.subr.bf16.mxu0 0
    %1701 = vmatpush1.bf16.msra.mxu0 0
    %1702 = vmatprep.subr.bf16.mxu0 0
    %1703 = vmatpush1.bf16.msra.mxu0 0
    %1704 = vmatprep.subr.bf16.mxu0 0
    %1705 = vmatpush1.bf16.msra.mxu0 0
    %1706 = vmatprep.subr.bf16.mxu0 0
    %1707 = vmatpush1.bf16.msra.mxu0 0
    %1708 = vmatprep.mubr.bf16.mxu0 0
    %1709 = vmatmul.mubr.bf16.gmra.mrb[0].mxu0 %v1314
    %v1710 = vpop.f32.mrb[0].mxu0
    %v1711 = vadd.f32 %v1376, %v1710
    %v1712 = vpop.f32.mrb[0].mxu0
    %v1713 = vadd.f32 %v1380, %v1712
    %v1714 = vpop.f32.mrb[0].mxu0
    %v1715 = vpop.f32.mrb[0].mxu0
    %1716 = vdwg.mxu0
    %1717 = vmatprep.subr.bf16.mxu0 %v1544
    %1718 = vmatpush1.bf16.msra.mxu0 %v1543
    %1719 = vmatprep.subr.bf16.mxu0 %v1550
    %1720 = vmatpush1.bf16.msra.mxu0 %v1549
    %1721 = vmatprep.subr.bf16.mxu0 %v1556
    %1722 = vmatpush1.bf16.msra.mxu0 %v1555
    %1723 = vmatprep.subr.bf16.mxu0 %v1562
    %1724 = vmatpush1.bf16.msra.mxu0 %v1561
    %1725 = vmatprep.subr.bf16.mxu0 %v1568
    %1726 = vmatpush1.bf16.msra.mxu0 %v1567
    %1727 = vmatprep.subr.bf16.mxu0 %v1574
    %1728 = vmatpush1.bf16.msra.mxu0 %v1573
    %1729 = vmatprep.subr.bf16.mxu0 %v1580
    %1730 = vmatpush1.bf16.msra.mxu0 %v1579
    %1731 = vmatprep.subr.bf16.mxu0 %v1586
    %1732 = vmatpush1.bf16.msra.mxu0 %v1585
    %1733 = vmatprep.subr.bf16.mxu0 0
    %1734 = vmatpush1.bf16.msra.mxu0 0
    %1735 = vmatprep.subr.bf16.mxu0 0
    %1736 = vmatpush1.bf16.msra.mxu0 0
    %1737 = vmatprep.subr.bf16.mxu0 0
    %1738 = vmatpush1.bf16.msra.mxu0 0
    %1739 = vmatprep.subr.bf16.mxu0 0
    %1740 = vmatpush1.bf16.msra.mxu0 0
    %1741 = vmatprep.subr.bf16.mxu0 0
    %1742 = vmatpush1.bf16.msra.mxu0 0
    %1743 = vmatprep.subr.bf16.mxu0 0
    %1744 = vmatpush1.bf16.msra.mxu0 0
    %1745 = vmatprep.subr.bf16.mxu0 0
    %1746 = vmatpush1.bf16.msra.mxu0 0
    %1747 = vmatprep.subr.bf16.mxu0 0
    %1748 = vmatpush1.bf16.msra.mxu0 0
    %1749 = vmatprep.mubr.bf16.mxu0 0
    %1750 = vmatmul.mubr.bf16.gmra.mrb[0].mxu0 %v1314
    %v1751 = vpop.f32.mrb[0].mxu0
    %v1752 = vadd.f32 %v1384, %v1751
    %v1753 = vpop.f32.mrb[0].mxu0
    %v1754 = vadd.f32 %v1388, %v1753
    %v1755 = vpop.f32.mrb[0].mxu0
    %v1756 = vpop.f32.mrb[0].mxu0
    %1757 = vdwg.mxu0
    %v1758 = vpack.c.bf16 %v1312, %v1312
    %v1759 = vpack.c.bf16 %v1313, %v1313
    %1760 = vmatprep.subr.bf16.mxu0 %v780
    %1761 = vmatpush1.bf16.msra.mxu0 %v779
    %1762 = vmatprep.subr.bf16.mxu0 %v786
    %1763 = vmatpush1.bf16.msra.mxu0 %v785
    %1764 = vmatprep.subr.bf16.mxu0 %v792
    %1765 = vmatpush1.bf16.msra.mxu0 %v791
    %1766 = vmatprep.subr.bf16.mxu0 %v798
    %1767 = vmatpush1.bf16.msra.mxu0 %v797
    %1768 = vmatprep.subr.bf16.mxu0 %v804
    %1769 = vmatpush1.bf16.msra.mxu0 %v803
    %1770 = vmatprep.subr.bf16.mxu0 %v810
    %1771 = vmatpush1.bf16.msra.mxu0 %v809
    %1772 = vmatprep.subr.bf16.mxu0 %v816
    %1773 = vmatpush1.bf16.msra.mxu0 %v815
    %1774 = vmatprep.subr.bf16.mxu0 %v822
    %1775 = vmatpush1.bf16.msra.mxu0 %v821
    %1776 = vmatprep.subr.bf16.mxu0 %v828
    %1777 = vmatpush1.bf16.msra.mxu0 %v827
    %1778 = vmatprep.subr.bf16.mxu0 %v834
    %1779 = vmatpush1.bf16.msra.mxu0 %v833
    %1780 = vmatprep.subr.bf16.mxu0 %v840
    %1781 = vmatpush1.bf16.msra.mxu0 %v839
    %1782 = vmatprep.subr.bf16.mxu0 %v846
    %1783 = vmatpush1.bf16.msra.mxu0 %v845
    %1784 = vmatprep.subr.bf16.mxu0 %v852
    %1785 = vmatpush1.bf16.msra.mxu0 %v851
    %1786 = vmatprep.subr.bf16.mxu0 %v858
    %1787 = vmatpush1.bf16.msra.mxu0 %v857
    %1788 = vmatprep.subr.bf16.mxu0 %v864
    %1789 = vmatpush1.bf16.msra.mxu0 %v863
    %1790 = vmatprep.subr.bf16.mxu0 %v870
    %1791 = vmatpush1.bf16.msra.mxu0 %v869
    %1792 = vmatprep.mubr.bf16.mxu0 %v1759
    %1793 = vmatmul.mubr.bf16.gmra.mrb[0].mxu0 %v1758
    %v1794 = vpop.f32.mrb[0].mxu0
    %v1795 = vadd.f32 0.0, %v1794
    %v1796 = vpop.f32.mrb[0].mxu0
    %v1797 = vadd.f32 0.0, %v1796
    %v1798 = vpop.f32.mrb[0].mxu0
    %v1799 = vpop.f32.mrb[0].mxu0
    %1800 = vdwg.mxu0
    %1801 = vmatprep.subr.bf16.mxu0 %v782
    %1802 = vmatpush1.bf16.msra.mxu0 %v781
    %1803 = vmatprep.subr.bf16.mxu0 %v788
    %1804 = vmatpush1.bf16.msra.mxu0 %v787
    %1805 = vmatprep.subr.bf16.mxu0 %v794
    %1806 = vmatpush1.bf16.msra.mxu0 %v793
    %1807 = vmatprep.subr.bf16.mxu0 %v800
    %1808 = vmatpush1.bf16.msra.mxu0 %v799
    %1809 = vmatprep.subr.bf16.mxu0 %v806
    %1810 = vmatpush1.bf16.msra.mxu0 %v805
    %1811 = vmatprep.subr.bf16.mxu0 %v812
    %1812 = vmatpush1.bf16.msra.mxu0 %v811
    %1813 = vmatprep.subr.bf16.mxu0 %v818
    %1814 = vmatpush1.bf16.msra.mxu0 %v817
    %1815 = vmatprep.subr.bf16.mxu0 %v824
    %1816 = vmatpush1.bf16.msra.mxu0 %v823
    %1817 = vmatprep.subr.bf16.mxu0 %v830
    %1818 = vmatpush1.bf16.msra.mxu0 %v829
    %1819 = vmatprep.subr.bf16.mxu0 %v836
    %1820 = vmatpush1.bf16.msra.mxu0 %v835
    %1821 = vmatprep.subr.bf16.mxu0 %v842
    %1822 = vmatpush1.bf16.msra.mxu0 %v841
    %1823 = vmatprep.subr.bf16.mxu0 %v848
    %1824 = vmatpush1.bf16.msra.mxu0 %v847
    %1825 = vmatprep.subr.bf16.mxu0 %v854
    %1826 = vmatpush1.bf16.msra.mxu0 %v853
    %1827 = vmatprep.subr.bf16.mxu0 %v860
    %1828 = vmatpush1.bf16.msra.mxu0 %v859
    %1829 = vmatprep.subr.bf16.mxu0 %v866
    %1830 = vmatpush1.bf16.msra.mxu0 %v865
    %1831 = vmatprep.subr.bf16.mxu0 %v872
    %1832 = vmatpush1.bf16.msra.mxu0 %v871
    %1833 = vmatprep.mubr.bf16.mxu0 %v1759
    %1834 = vmatmul.mubr.bf16.gmra.mrb[0].mxu0 %v1758
    %v1835 = vpop.f32.mrb[0].mxu0
    %v1836 = vadd.f32 0.0, %v1835
    %v1837 = vpop.f32.mrb[0].mxu0
    %v1838 = vadd.f32 0.0, %v1837
    %v1839 = vpop.f32.mrb[0].mxu0
    %v1840 = vpop.f32.mrb[0].mxu0
    %1841 = vdwg.mxu0
    %1842 = vmatprep.subr.bf16.mxu0 %v784
    %1843 = vmatpush1.bf16.msra.mxu0 %v783
    %1844 = vmatprep.subr.bf16.mxu0 %v790
    %1845 = vmatpush1.bf16.msra.mxu0 %v789
    %1846 = vmatprep.subr.bf16.mxu0 %v796
    %1847 = vmatpush1.bf16.msra.mxu0 %v795
    %1848 = vmatprep.subr.bf16.mxu0 %v802
    %1849 = vmatpush1.bf16.msra.mxu0 %v801
    %1850 = vmatprep.subr.bf16.mxu0 %v808
    %1851 = vmatpush1.bf16.msra.mxu0 %v807
    %1852 = vmatprep.subr.bf16.mxu0 %v814
    %1853 = vmatpush1.bf16.msra.mxu0 %v813
    %1854 = vmatprep.subr.bf16.mxu0 %v820
    %1855 = vmatpush1.bf16.msra.mxu0 %v819
    %1856 = vmatprep.subr.bf16.mxu0 %v826
    %1857 = vmatpush1.bf16.msra.mxu0 %v825
    %1858 = vmatprep.subr.bf16.mxu0 %v832
    %1859 = vmatpush1.bf16.msra.mxu0 %v831
    %1860 = vmatprep.subr.bf16.mxu0 %v838
    %1861 = vmatpush1.bf16.msra.mxu0 %v837
    %1862 = vmatprep.subr.bf16.mxu0 %v844
    %1863 = vmatpush1.bf16.msra.mxu0 %v843
    %1864 = vmatprep.subr.bf16.mxu0 %v850
    %1865 = vmatpush1.bf16.msra.mxu0 %v849
    %1866 = vmatprep.subr.bf16.mxu0 %v856
    %1867 = vmatpush1.bf16.msra.mxu0 %v855
    %1868 = vmatprep.subr.bf16.mxu0 %v862
    %1869 = vmatpush1.bf16.msra.mxu0 %v861
    %1870 = vmatprep.subr.bf16.mxu0 %v868
    %1871 = vmatpush1.bf16.msra.mxu0 %v867
    %1872 = vmatprep.subr.bf16.mxu0 %v874
    %1873 = vmatpush1.bf16.msra.mxu0 %v873
    %1874 = vmatprep.mubr.bf16.mxu0 %v1759
    %1875 = vmatmul.mubr.bf16.gmra.mrb[0].mxu0 %v1758
    %v1876 = vpop.f32.mrb[0].mxu0
    %v1877 = vadd.f32 0.0, %v1876
    %v1878 = vpop.f32.mrb[0].mxu0
    %v1879 = vadd.f32 0.0, %v1878
    %v1880 = vpop.f32.mrb[0].mxu0
    %v1881 = vpop.f32.mrb[0].mxu0
    %1882 = vdwg.mxu0
    %v1883 = vadd.f32 %v1670, %v1795
    %v1884 = vadd.f32 %v1672, %v1797
    %v1885 = vadd.f32 %v1711, %v1836
    %v1886 = vadd.f32 %v1713, %v1838
    %v1887 = vadd.f32 %v1877, %v1126
    %v1888 = vadd.f32 %v1879, %v1130
    %v1889 = vld [vmem:[%s8] sm:$0xff]
    %v1890 = vld [vmem:[%s8 + $0x8] sm:$0xf]
    %v1891 = vld [vmem:[%s9] sm:$0xf]
    %v1892 = vld [vmem:[%s9 + $0x4] sm:$0xf]
    %v1893 = vld [vmem:[%s9 + $0x8] sm:$0xf]
    %v1894 = vld [vmem:[%s9 + $0xc] sm:$0xf]
    %v1895 = vld [vmem:[%s9 + $0x10] sm:$0xf]
    %v1896 = vld [vmem:[%s9 + $0x14] sm:$0xf]
    %v1897 = vld [vmem:[%s9 + $0x18] sm:$0xf]
    %v1898 = vld [vmem:[%s9 + $0x1c] sm:$0xf]
    %v1899 = vld [vmem:[%s9 + $0x20] sm:$0xf]
    %v1900 = vld [vmem:[%s9 + $0x24] sm:$0xf]
    %v1901 = vld [vmem:[%s9 + $0x28] sm:$0xf]
    %v1902 = vld [vmem:[%s9 + $0x2c] sm:$0xf]
    %v1903 = vld [vmem:[%s9 + $0x30] sm:$0xf]
    %v1904 = vld [vmem:[%s9 + $0x34] sm:$0xf]
    %v1905 = vld [vmem:[%s9 + $0x38] sm:$0xf]
    %v1906 = vld [vmem:[%s9 + $0x3c] sm:$0xf]
    %v1907 = vld [vmem:[%s9 + $0x40] sm:$0xf]
    %v1908 = vld [vmem:[%s9 + $0x44] sm:$0xf]
    %v1909 = vld [vmem:[%s9 + $0x48] sm:$0xf]
    %v1910 = vld [vmem:[%s9 + $0x4c] sm:$0xf]
    %v1911 = vld [vmem:[%s9 + $0x50] sm:$0xf]
    %v1912 = vld [vmem:[%s9 + $0x54] sm:$0xf]
    %v1913 = vld [vmem:[%s9 + $0x58] sm:$0xf]
    %v1914 = vld [vmem:[%s9 + $0x5c] sm:$0xf]
    %v1915 = vld [vmem:[%s9 + $0x60] sm:$0xf]
    %v1916 = vld [vmem:[%s9 + $0x64] sm:$0xf]
    %v1917 = vld [vmem:[%s9 + $0x68] sm:$0xf]
    %v1918 = vld [vmem:[%s9 + $0x6c] sm:$0xf]
    %v1919 = vld [vmem:[%s9 + $0x70] sm:$0xf]
    %v1920 = vld [vmem:[%s9 + $0x74] sm:$0xf]
    %v1921 = vld [vmem:[%s9 + $0x78] sm:$0xf]
    %v1922 = vld [vmem:[%s9 + $0x7c] sm:$0xf]
    %v1923 = vld [vmem:[%s10] sm:$0x1]
    %v1926 = vunpack.c.l.s4 1966171168
    %v1927 = vunpack.c.0.s8 %v1926
    %v1928 = vlaneseq
    %v1929 = vshrl.u32 %v1928, 7
    %v1930 = vsub.s32 %v1927, %v1929
    %v1931 = vrot.slane %v1889, %v1930
    %v1932 = vcombine.high %v1931, %v1931
    %v1933 = vlaneseq
    %v1934 = vshrl.u32 %v1933, 7
    %v1935 = vsub.s32 0, %v1934
    %v1936 = vrot.slane %v1931, %v1935
    %v1937 = vlaneseq
    %v1938 = vshrl.u32 %v1937, 7
    %v1939 = vsub.s32 1, %v1938
    %v1940 = vrot.slane %v1931, %v1939
    %v1941 = vlaneseq
    %v1942 = vshrl.u32 %v1941, 7
    %v1943 = vsub.s32 2, %v1942
    %v1944 = vrot.slane %v1931, %v1943
    %v1945 = vlaneseq
    %v1946 = vshrl.u32 %v1945, 7
    %v1947 = vsub.s32 3, %v1946
    %v1948 = vrot.slane %v1931, %v1947
    %v1949 = vlaneseq
    %v1950 = vshrl.u32 %v1949, 7
    %v1951 = vsub.s32 0, %v1950
    %v1952 = vrot.slane %v1932, %v1951
    %v1953 = vlaneseq
    %v1954 = vshrl.u32 %v1953, 7
    %v1955 = vsub.s32 1, %v1954
    %v1956 = vrot.slane %v1932, %v1955
    %v1957 = vlaneseq
    %v1958 = vshrl.u32 %v1957, 7
    %v1959 = vsub.s32 2, %v1958
    %v1960 = vrot.slane %v1932, %v1959
    %v1961 = vlaneseq
    %v1962 = vshrl.u32 %v1961, 7
    %v1963 = vsub.s32 3, %v1962
    %v1964 = vrot.slane %v1932, %v1963
    %v1973 = vadd.f32 %v1883, %v1936
    %v1974 = vadd.f32 %v1884, %v1940
    %v1975 = vadd.f32 %v1885, %v1944
    %v1976 = vadd.f32 %v1886, %v1948
    %v1977 = vadd.f32 %v1883, %v1952
    %v1978 = vadd.f32 %v1884, %v1956
    %v1979 = vadd.f32 %v1885, %v1960
    %v1980 = vadd.f32 %v1886, %v1964
    %v1981 = vxor.u32 %v1973, 2147483648
    %v1982 = vxor.u32 %v1974, 2147483648
    %v1983 = vxor.u32 %v1975, 2147483648
    %v1984 = vxor.u32 %v1976, 2147483648
    %v1985 = vxor.u32 %v1977, 2147483648
    %v1986 = vxor.u32 %v1978, 2147483648
    %v1987 = vxor.u32 %v1979, 2147483648
    %v1988 = vxor.u32 %v1980, 2147483648
    %v1989 = vmul.f32 %v1981, 1.442695
    %v1990 = vpow.pop %v1989
    %v1991 = vmul.f32 %v1982, 1.442695
    %v1992 = vpow.pop %v1991
    %v1993 = vmul.f32 %v1983, 1.442695
    %v1994 = vpow.pop %v1993
    %v1995 = vmul.f32 %v1984, 1.442695
    %v1996 = vpow.pop %v1995
    %v1997 = vmul.f32 %v1985, 1.442695
    %v1998 = vpow.pop %v1997
    %v1999 = vmul.f32 %v1986, 1.442695
    %v2000 = vpow.pop %v1999
    %v2001 = vmul.f32 %v1987, 1.442695
    %v2002 = vpow.pop %v2001
    %v2003 = vmul.f32 %v1988, 1.442695
    %v2004 = vpow.pop %v2003
    %v2005 = vadd.f32 %v1990, 1.0
    %v2006 = vadd.f32 %v1992, 1.0
    %v2007 = vadd.f32 %v1994, 1.0
    %v2008 = vadd.f32 %v1996, 1.0
    %v2009 = vadd.f32 %v1998, 1.0
    %v2010 = vadd.f32 %v2000, 1.0
    %v2011 = vadd.f32 %v2002, 1.0
    %v2012 = vadd.f32 %v2004, 1.0
    %v2013 = vrcp.pop %v2005
    %v2014 = vmul.f32 1.0, %v2013
    %v2015 = vrcp.pop %v2006
    %v2016 = vmul.f32 1.0, %v2015
    %v2017 = vrcp.pop %v2007
    %v2018 = vmul.f32 1.0, %v2017
    %v2019 = vrcp.pop %v2008
    %v2020 = vmul.f32 1.0, %v2019
    %v2021 = vrcp.pop %v2009
    %v2022 = vmul.f32 1.0, %v2021
    %v2023 = vrcp.pop %v2010
    %v2024 = vmul.f32 1.0, %v2023
    %v2025 = vrcp.pop %v2011
    %v2026 = vmul.f32 1.0, %v2025
    %v2027 = vrcp.pop %v2012
    %v2028 = vmul.f32 1.0, %v2027
    %v2031 = vunpack.c.l.s4 1966171168
    %v2032 = vunpack.c.0.s8 %v2031
    %v2033 = vlaneseq
    %v2034 = vshrl.u32 %v2033, 7
    %v2035 = vsub.s32 %v2032, %v2034
    %v2036 = vrot.slane %v1890, %v2035
    %v2037 = vcombine.high %v2036, %v2036
    %v2038 = vlaneseq
    %v2039 = vshrl.u32 %v2038, 7
    %v2040 = vsub.s32 0, %v2039
    %v2041 = vrot.slane %v2036, %v2040
    %v2042 = vlaneseq
    %v2043 = vshrl.u32 %v2042, 7
    %v2044 = vsub.s32 1, %v2043
    %v2045 = vrot.slane %v2036, %v2044
    %v2046 = vlaneseq
    %v2047 = vshrl.u32 %v2046, 7
    %v2048 = vsub.s32 0, %v2047
    %v2049 = vrot.slane %v2037, %v2048
    %v2050 = vlaneseq
    %v2051 = vshrl.u32 %v2050, 7
    %v2052 = vsub.s32 1, %v2051
    %v2053 = vrot.slane %v2037, %v2052
    %v2058 = vadd.f32 %v1752, %v2041
    %v2059 = vadd.f32 %v1754, %v2045
    %v2060 = vadd.f32 %v1752, %v2049
    %v2061 = vadd.f32 %v1754, %v2053
    %v2062 = vmul.f32 %v2014, %v1887
    %v2063 = vmul.f32 %v2016, %v1888
    %v2064 = vmul.f32 %v2022, %v1887
    %v2065 = vmul.f32 %v2024, %v1888
    %v2066 = vadd.f32 %v2058, %v2062
    %v2067 = vadd.f32 %v2059, %v2063
    %v2068 = vadd.f32 %v2060, %v2064
    %v2069 = vadd.f32 %v2061, %v2065
    %v2070 = vtanh.pop %v2066
    %v2071 = vtanh.pop %v2067
    %v2072 = vtanh.pop %v2068
    %v2073 = vtanh.pop %v2069
    %v2074 = vsub.f32 %v1312, %v2070
    %v2075 = vsub.f32 %v1313, %v2071
    %v2076 = vsub.f32 %v1312, %v2072
    %v2077 = vsub.f32 %v1313, %v2073
    %v2078 = vmul.f32 %v2018, %v2074
    %v2079 = vmul.f32 %v2020, %v2075
    %v2080 = vmul.f32 %v2026, %v2076
    %v2081 = vmul.f32 %v2028, %v2077
    %v2082 = vadd.f32 %v2070, %v2078
    %v2083 = vadd.f32 %v2071, %v2079
    %v2084 = vadd.f32 %v2072, %v2080
    %v2085 = vadd.f32 %v2073, %v2081
    %v2086 = vpack.c.bf16 %v2084, %v2082
    %v2087 = vpack.c.bf16 %v2085, %v2083
    %v2089 = vlaneseq
    %v2090 = vshrl.u32 %v2089, 7
    %v2091 = vsub.s32 0, %v2090
    %v2092 = vrot.slane %v1923, %v2091
    %v2126 = vunpack.c.l.b16 %v1891
    %v2127 = vunpack.c.l.b16 %v1892
    %v2128 = vunpack.c.l.b16 %v1893
    %v2129 = vunpack.c.l.b16 %v1894
    %v2130 = vunpack.c.l.b16 %v1895
    %v2131 = vunpack.c.l.b16 %v1896
    %v2132 = vunpack.c.l.b16 %v1897
    %v2133 = vunpack.c.l.b16 %v1898
    %v2134 = vunpack.c.l.b16 %v1899
    %v2135 = vunpack.c.l.b16 %v1900
    %v2136 = vunpack.c.l.b16 %v1901
    %v2137 = vunpack.c.l.b16 %v1902
    %v2138 = vunpack.c.l.b16 %v1903
    %v2139 = vunpack.c.l.b16 %v1904
    %v2140 = vunpack.c.l.b16 %v1905
    %v2141 = vunpack.c.l.b16 %v1906
    %v2142 = vunpack.c.l.b16 %v1907
    %v2143 = vunpack.c.l.b16 %v1908
    %v2144 = vunpack.c.l.b16 %v1909
    %v2145 = vunpack.c.l.b16 %v1910
    %v2146 = vunpack.c.l.b16 %v1911
    %v2147 = vunpack.c.l.b16 %v1912
    %v2148 = vunpack.c.l.b16 %v1913
    %v2149 = vunpack.c.l.b16 %v1914
    %v2150 = vunpack.c.l.b16 %v1915
    %v2151 = vunpack.c.l.b16 %v1916
    %v2152 = vunpack.c.l.b16 %v1917
    %v2153 = vunpack.c.l.b16 %v1918
    %v2154 = vunpack.c.l.b16 %v1919
    %v2155 = vunpack.c.l.b16 %v1920
    %v2156 = vunpack.c.l.b16 %v1921
    %v2157 = vunpack.c.l.b16 %v1922
    %v2158 = vpack.c.b16 %v2127, %v2126
    %v2159 = vpack.c.b16 %v2129, %v2128
    %v2160 = vpack.c.b16 %v2131, %v2130
    %v2161 = vpack.c.b16 %v2133, %v2132
    %v2162 = vpack.c.b16 %v2135, %v2134
    %v2163 = vpack.c.b16 %v2137, %v2136
    %v2164 = vpack.c.b16 %v2139, %v2138
    %v2165 = vpack.c.b16 %v2141, %v2140
    %v2166 = vpack.c.b16 %v2143, %v2142
    %v2167 = vpack.c.b16 %v2145, %v2144
    %v2168 = vpack.c.b16 %v2147, %v2146
    %v2169 = vpack.c.b16 %v2149, %v2148
    %v2170 = vpack.c.b16 %v2151, %v2150
    %v2171 = vpack.c.b16 %v2153, %v2152
    %v2172 = vpack.c.b16 %v2155, %v2154
    %v2173 = vpack.c.b16 %v2157, %v2156
    %2190 = vmatprep.subr.bf16.mxu0 0
    %2191 = vmatpush1.bf16.msra.mxu0 %v2158
    %2192 = vmatprep.subr.bf16.mxu0 0
    %2193 = vmatpush1.bf16.msra.mxu0 %v2159
    %2194 = vmatprep.subr.bf16.mxu0 0
    %2195 = vmatpush1.bf16.msra.mxu0 %v2160
    %2196 = vmatprep.subr.bf16.mxu0 0
    %2197 = vmatpush1.bf16.msra.mxu0 %v2161
    %2198 = vmatprep.subr.bf16.mxu0 0
    %2199 = vmatpush1.bf16.msra.mxu0 %v2162
    %2200 = vmatprep.subr.bf16.mxu0 0
    %2201 = vmatpush1.bf16.msra.mxu0 %v2163
    %2202 = vmatprep.subr.bf16.mxu0 0
    %2203 = vmatpush1.bf16.msra.mxu0 %v2164
    %2204 = vmatprep.subr.bf16.mxu0 0
    %2205 = vmatpush1.bf16.msra.mxu0 %v2165
    %2206 = vmatprep.subr.bf16.mxu0 0
    %2207 = vmatpush1.bf16.msra.mxu0 %v2166
    %2208 = vmatprep.subr.bf16.mxu0 0
    %2209 = vmatpush1.bf16.msra.mxu0 %v2167
    %2210 = vmatprep.subr.bf16.mxu0 0
    %2211 = vmatpush1.bf16.msra.mxu0 %v2168
    %2212 = vmatprep.subr.bf16.mxu0 0
    %2213 = vmatpush1.bf16.msra.mxu0 %v2169
    %2214 = vmatprep.subr.bf16.mxu0 0
    %2215 = vmatpush1.bf16.msra.mxu0 %v2170
    %2216 = vmatprep.subr.bf16.mxu0 0
    %2217 = vmatpush1.bf16.msra.mxu0 %v2171
    %2218 = vmatprep.subr.bf16.mxu0 0
    %2219 = vmatpush1.bf16.msra.mxu0 %v2172
    %2220 = vmatprep.subr.bf16.mxu0 0
    %2221 = vmatpush1.bf16.msra.mxu0 %v2173
    %2222 = vmatprep.mubr.bf16.mxu0 %v2087
    %2223 = vmatmul.mubr.bf16.gmra.mrb[0].mxu0 %v2086
    %v2224 = vpop.f32.mrb[0].mxu0
    %v2225 = vadd.f32 %v2092, %v2224
    %v2226 = vpop.f32.mrb[0].mxu0
    %v2227 = vpop.f32.mrb[0].mxu0
    %v2228 = vadd.f32 %v2092, %v2227
    %v2229 = vpop.f32.mrb[0].mxu0
    %2230 = vdwg.mxu0
    %2232 = vrot.lane.b32.xlu0 %v2228, 16
    %v2233 = vpop.permute.xlu0 %2232
    %v2235 = vsel %vm233, %v2225, %v2233
    %vm2236 = vcmask 261120
    %v2237 = vsel %vm2236, %v2235, 0.0
    %2238 = vst [vmem:[%s11] sm:$0xff] %v2237
    // Predicated region
    $region54: #{segrnn_forward.1} parent=1 // pred_check
      _
    $region55: #{segrnn_forward.1} parent=1 // pred_check_branch
      %2240 = sbr.rel (0) target = $region57
    $region56: #{segrnn_forward.1} parent=1 // pred_region
      _
    $region57: #{segrnn_forward.1} parent=1 // pred_fallthru
      _
    // Predicated region
    $region58: #{segrnn_forward.1} parent=1 // pred_check
      _
    $region59: #{segrnn_forward.1} parent=1 // pred_check_branch
      %2242 = sbr.rel (0) target = $region61
    $region60: #{segrnn_forward.1} parent=1 // pred_region
      _
    $region61: #{segrnn_forward.1} parent=1 // pred_fallthru
      _
    %2243 = vsyncpa [#allocation3], 1
    %2244 = vsyncpa [#allocation5], 1

</llo_original>
